<compile_context>
chip_gen: v7x
topology: tpu7x:2x2x1
jax: 0.10.0
libtpu: 0.0.40
codegen_flags: <defaults>
</compile_context>

<pallas_src>
import math
from functools import partial

import jax
import jax.numpy as jnp
import numpy as np
from jax import lax
from jax.experimental import pallas as pl
from jax.experimental.pallas import tpu as pltpu

LN_EPS = 1e-6


def _layernorm(x, w, b, eps=LN_EPS):
    # Two-pass (numerically safer than E[x^2] - E[x]^2).
    m = jnp.mean(x, axis=-1, keepdims=True)
    c = x - m
    var = jnp.mean(c * c, axis=-1, keepdims=True)
    return c * lax.rsqrt(var + eps) * w + b


def _gelu_exact(x):
    # torch.nn.GELU default: exact erf formulation.
    return 0.5 * x * (1.0 + lax.erf(x * (1.0 / math.sqrt(2.0))))


def encoder_block_kernel(
    x_ref,
    ln1w_ref, ln1b_ref,
    wq_ref, bq_ref,
    wkv_ref, bkv_ref,
    wo_ref, bo_ref,
    ln2w_ref, ln2b_ref,
    w1_ref, b1_ref, w2_ref, b2_ref,
    out_ref,
    k_s, v_s,
    *, num_heads: int, seq_tile: int, seq_len: int,
):
    qi = pl.program_id(1)            # sequence-tile index (innermost grid axis)
    s_pad = x_ref.shape[1]           # padded sequence length (static)
    D = x_ref.shape[2]
    H = num_heads
    hd = D // H
    scale = 1.0 / math.sqrt(hd)
    bf16 = jnp.bfloat16
    tq = seq_tile

    # ---- once per batch element: LN1 + fused K/V projection over full seq ----
    @pl.when(qi == 0)
    def _():
        x_full = x_ref[0]                                     # (S_pad, D) f32
        h1 = _layernorm(x_full, ln1w_ref[...], ln1b_ref[...])
        kv = jnp.dot(h1.astype(bf16), wkv_ref[...],
                     preferred_element_type=jnp.float32) + bkv_ref[...]
        # Two dense, lane-dense stores (no per-head masked stores).
        k_s[...] = kv[:, :D].astype(bf16)                     # (S_pad, D) bf16
        v_s[...] = kv[:, D:].astype(bf16)                     # (S_pad, D) bf16

    # ---- per (batch, seq-tile): Q proj + attention + out proj + MLP ----
    q_start = pl.multiple_of(qi * tq, tq)
    x_t = x_ref[0, pl.ds(q_start, tq), :]                     # (tq, D) f32
    h1_t = _layernorm(x_t, ln1w_ref[...], ln1b_ref[...])
    q = jnp.dot(h1_t.astype(bf16), wq_ref[...],
                preferred_element_type=jnp.float32) + bq_ref[...]
    q_bf = q.astype(bf16)                                     # (tq, D) bf16

    # Key-padding mask (static check: only emitted when padding exists).
    if seq_len < s_pad:
        key_valid = lax.broadcasted_iota(jnp.int32, (tq, s_pad), 1) < seq_len
    else:
        key_valid = None

    # Statically unrolled per-head attention; all score/prob tensors are
    # (tq, S_pad) lane-dense, slices are static lane slices.
    ctx_parts = []
    for h in range(H):
        lo = h * hd
        q_h = q_bf[:, lo:lo + hd]                             # (tq, hd) bf16
        k_h = k_s[:, lo:lo + hd]                              # (S_pad, hd) bf16
        v_h = v_s[:, lo:lo + hd]                              # (S_pad, hd) bf16

        s_h = lax.dot_general(q_h, k_h, (((1,), (1,)), ((), ())),
                              preferred_element_type=jnp.float32) * scale
        if key_valid is not None:
            s_h = jnp.where(key_valid, s_h, -1e30)
        s_h = s_h - jnp.max(s_h, axis=-1, keepdims=True)
        p_h = jnp.exp(s_h)
        p_h = p_h * pl.reciprocal(jnp.sum(p_h, axis=-1, keepdims=True),
                                  approx=True)
        ctx_parts.append(jnp.dot(p_h.astype(bf16), v_h,
                                 preferred_element_type=jnp.float32))

    ctx = jnp.concatenate(ctx_parts, axis=-1)                 # (tq, D) f32
    attn = jnp.dot(ctx.astype(bf16), wo_ref[...],
                   preferred_element_type=jnp.float32) + bo_ref[...]

    x2 = x_t + attn                                           # residual 1

    h2 = _layernorm(x2, ln2w_ref[...], ln2b_ref[...])
    m = jnp.dot(h2.astype(bf16), w1_ref[...],
                preferred_element_type=jnp.float32) + b1_ref[...]
    m = _gelu_exact(m)
    y = jnp.dot(m.astype(bf16), w2_ref[...],
                preferred_element_type=jnp.float32) + b2_ref[...]

    out_ref[0] = (x2 + y).astype(out_ref.dtype)               # residual 2


def _round_up(n, m):
    return ((n + m - 1) // m) * m


def _default_seq_tile():
    # v6e / v7x MXUs are 2x256^2 -> a 256-row tile fills them; v5e's 4x128^2 is
    # already saturated at 128.  The query is trace-time only and guarded.
    try:
        info = pltpu.get_tpu_info()
        ver = str(getattr(info, "chip_version", getattr(info, "version", ""))).lower()
        if "5" in ver:
            return 128
        if "6" in ver or "7" in ver:
            return 256
    except Exception:
        pass
    return 128


def _vmem_limit_bytes():
    # Size the scoped VMEM limit from the actual chip (v7x has only 64 MiB).
    try:
        cap = int(pltpu.get_tpu_info().vmem_capacity_bytes)
    except Exception:
        cap = 64 * 1024 * 1024          # conservative (v7x-sized) fallback
    return int(min(cap * 3 // 4, 96 * 1024 * 1024))


def encoder_block(x, params, num_heads, *, seq_tile=None):
    """x: (B, S, D) float32; params: dict of f32 arrays in (in, out) layout."""
    B, S, D = x.shape
    assert D % num_heads == 0
    bf16 = jnp.bfloat16

    if seq_tile is None:
        seq_tile = _default_seq_tile()
    if S <= seq_tile:
        s_pad = _round_up(S, 8)        # single tile covering the whole (padded) seq
        seq_tile = s_pad
    else:
        assert seq_tile % 8 == 0, "seq_tile must be a multiple of 8"
        s_pad = _round_up(S, seq_tile)
    n_tiles = s_pad // seq_tile

    x_in = x if s_pad == S else jnp.pad(x, ((0, 0), (0, s_pad - S), (0, 0)))

    # Fused K/V weight/bias; matmul weights cast to bf16 (MXU-native path,
    # halves weight VMEM / HBM bytes).  Biases and LN params stay f32.
    wkv = jnp.concatenate([params["wk"], params["wv"]], axis=1).astype(bf16)
    bkv = jnp.concatenate([params["bk"], params["bv"]], axis=1)

    ordered = [
        params["ln1_w"], params["ln1_b"],
        params["wq"].astype(bf16), params["bq"],
        wkv, bkv,
        params["wo"].astype(bf16), params["bo"],
        params["ln2_w"], params["ln2_b"],
        params["w1"].astype(bf16), params["b1"],
        params["w2"].astype(bf16), params["b2"],
    ]

    x_spec = pl.BlockSpec((1, s_pad, D), lambda b, qi: (b, 0, 0))
    out_spec = pl.BlockSpec((1, seq_tile, D), lambda b, qi: (b, qi, 0))

    def const_spec(arr):
        nd = arr.ndim
        return pl.BlockSpec(arr.shape, lambda b, qi, _nd=nd: (0,) * _nd)

    kernel = partial(encoder_block_kernel, num_heads=num_heads,
                     seq_tile=seq_tile, seq_len=S)
    out_shape = jax.ShapeDtypeStruct((B, s_pad, D), x.dtype)
    scratch = [pltpu.VMEM((s_pad, D), bf16) for _ in range(2)]   # K and V caches

    out = pl.pallas_call(
        kernel,
        out_shape=out_shape,
        grid=(B, n_tiles),
        in_specs=[x_spec] + [const_spec(a) for a in ordered],
        out_specs=out_spec,
        scratch_shapes=scratch,
        compiler_params=pltpu.CompilerParams(
            # batch axis feeds megacore; seq-tile axis carries the K/V scratch.
            dimension_semantics=("parallel", "arbitrary"),
            vmem_limit_bytes=_vmem_limit_bytes(),
        ),
    )(x_in, *ordered)

    if s_pad != S:
        out = out[:, :S, :]
    return out


def encoder_block_reference(x, params, num_heads):
    """Pure-JAX f32 reference with identical math (for verification)."""
    B, S, D = x.shape
    hd = D // num_heads
    scale = 1.0 / math.sqrt(hd)

    def ln(t, w, b):
        mu = jnp.mean(t, axis=-1, keepdims=True)
        var = jnp.mean((t - mu) ** 2, axis=-1, keepdims=True)
        return (t - mu) / jnp.sqrt(var + LN_EPS) * w + b

    h1 = ln(x, params["ln1_w"], params["ln1_b"])
    q = h1 @ params["wq"] + params["bq"]
    k = h1 @ params["wk"] + params["bk"]
    v = h1 @ params["wv"] + params["bv"]

    q = q.reshape(B, S, num_heads, hd).transpose(0, 2, 1, 3)
    k = k.reshape(B, S, num_heads, hd).transpose(0, 2, 1, 3)
    v = v.reshape(B, S, num_heads, hd).transpose(0, 2, 1, 3)
    s = jnp.einsum("bhqd,bhkd->bhqk", q, k) * scale
    p = jax.nn.softmax(s, axis=-1)
    o = jnp.einsum("bhqk,bhkd->bhqd", p, v)
    o = o.transpose(0, 2, 1, 3).reshape(B, S, D)
    attn = o @ params["wo"] + params["bo"]

    x2 = x + attn
    h2 = ln(x2, params["ln2_w"], params["ln2_b"])
    m = h2 @ params["w1"] + params["b1"]
    m = 0.5 * m * (1.0 + jax.lax.erf(m / math.sqrt(2.0)))
    y = m @ params["w2"] + params["b2"]
    return x2 + y


def make_params(key, hidden_dim, mlp_dim):
    ks = jax.random.split(key, 12)
    D, M = hidden_dim, mlp_dim
    s = 0.05
    # nn.MultiheadAttention in_proj_weight is (3D, D); split & transpose to (D, D).
    in_proj_w = jax.random.normal(ks[0], (3 * D, D), jnp.float32) * s
    in_proj_b = jax.random.normal(ks[1], (3 * D,), jnp.float32) * s
    params = {
        "ln1_w": (1.0 + 0.1 * jax.random.normal(ks[8], (D,), jnp.float32)).reshape(1, D),
        "ln1_b": (0.1 * jax.random.normal(ks[9], (D,), jnp.float32)).reshape(1, D),
        "wq": in_proj_w[0 * D:1 * D].T,
        "wk": in_proj_w[1 * D:2 * D].T,
        "wv": in_proj_w[2 * D:3 * D].T,
        "bq": in_proj_b[0 * D:1 * D].reshape(1, D),
        "bk": in_proj_b[1 * D:2 * D].reshape(1, D),
        "bv": in_proj_b[2 * D:3 * D].reshape(1, D),
        "wo": (jax.random.normal(ks[2], (D, D), jnp.float32) * s).T,
        "bo": (jax.random.normal(ks[3], (D,), jnp.float32) * s).reshape(1, D),
        "ln2_w": (1.0 + 0.1 * jax.random.normal(ks[10], (D,), jnp.float32)).reshape(1, D),
        "ln2_b": (0.1 * jax.random.normal(ks[11], (D,), jnp.float32)).reshape(1, D),
        "w1": (jax.random.normal(ks[4], (M, D), jnp.float32) * s).T,   # (D, M)
        "b1": (jax.random.normal(ks[5], (M,), jnp.float32) * s).reshape(1, M),
        "w2": (jax.random.normal(ks[6], (D, M), jnp.float32) * s).T,   # (M, D)
        "b2": (jax.random.normal(ks[7], (D,), jnp.float32) * s).reshape(1, D),
    }
    return params


if __name__ == "__main__":
    key = jax.random.PRNGKey(0)
    kx1, kx2, kx3, kp = jax.random.split(key, 4)

    D, H, M = 32, 4, 64
    params = make_params(kp, D, M)
    tol = dict(rtol=2e-2, atol=2e-2)   # bf16 matmuls + approx reciprocal

    # 1) aligned sequence (no padding), single tile
    x1 = jax.random.normal(kx1, (2, 8, D), jnp.float32)
    o1 = jax.block_until_ready(encoder_block(x1, params, H))
    np.testing.assert_allclose(np.asarray(o1),
                               np.asarray(encoder_block_reference(x1, params, H)), **tol)

    # 2) ragged sequence (S=7 -> padded to 8, padded keys masked in softmax)
    x2 = jax.random.normal(kx2, (2, 7, D), jnp.float32)
    o2 = jax.block_until_ready(encoder_block(x2, params, H))
    np.testing.assert_allclose(np.asarray(o2),
                               np.asarray(encoder_block_reference(x2, params, H)), **tol)

    # 3) multiple sequence tiles (exercises the qi==0 K/V prologue + scratch carry)
    x3 = jax.random.normal(kx3, (1, 16, D), jnp.float32)
    o3 = jax.block_until_ready(encoder_block(x3, params, H, seq_tile=8))
    np.testing.assert_allclose(np.asarray(o3),
                               np.asarray(encoder_block_reference(x3, params, H)), **tol)

    print("KERNEL_OK")
</pallas_src>

<mosaic_0001>
module attributes {stable_mosaic.version = 11 : i64} {
  func.func @encoder_block_kernel(%arg0: i32, %arg1: i32, %arg2: memref<1x8x32xf32, #tpu.memory_space<vmem>>, %arg3: memref<1x32xf32, #tpu.memory_space<vmem>>, %arg4: memref<1x32xf32, #tpu.memory_space<vmem>>, %arg5: memref<32x32xbf16, #tpu.memory_space<vmem>>, %arg6: memref<1x32xf32, #tpu.memory_space<vmem>>, %arg7: memref<32x64xbf16, #tpu.memory_space<vmem>>, %arg8: memref<1x64xf32, #tpu.memory_space<vmem>>, %arg9: memref<32x32xbf16, #tpu.memory_space<vmem>>, %arg10: memref<1x32xf32, #tpu.memory_space<vmem>>, %arg11: memref<1x32xf32, #tpu.memory_space<vmem>>, %arg12: memref<1x32xf32, #tpu.memory_space<vmem>>, %arg13: memref<32x64xbf16, #tpu.memory_space<vmem>>, %arg14: memref<1x64xf32, #tpu.memory_space<vmem>>, %arg15: memref<64x32xbf16, #tpu.memory_space<vmem>>, %arg16: memref<1x32xf32, #tpu.memory_space<vmem>>, %arg17: memref<1x8x32xf32, #tpu.memory_space<vmem>>, %arg18: memref<8x32xbf16, #tpu.memory_space<vmem>>, %arg19: memref<8x32xbf16, #tpu.memory_space<vmem>>) attributes {dimension_semantics = [#tpu.dimension_semantics<parallel>, #tpu.dimension_semantics<arbitrary>], iteration_bounds = array<i64: 2, 1>, scalar_prefetch = 0 : i64, scratch_operands = 2 : i64, tpu.core_type = #tpu.core_type<tc>, window_params = [{transform_indices = @transform_0, window_bounds = array<i64: 1, 8, 32>}, {pipeline_mode = #tpu.pipeline_mode<synchronous>, transform_indices = @transform_1, window_bounds = array<i64: 1, 32>}, {pipeline_mode = #tpu.pipeline_mode<synchronous>, transform_indices = @transform_2, window_bounds = array<i64: 1, 32>}, {pipeline_mode = #tpu.pipeline_mode<synchronous>, transform_indices = @transform_3, window_bounds = array<i64: 32, 32>}, {pipeline_mode = #tpu.pipeline_mode<synchronous>, transform_indices = @transform_4, window_bounds = array<i64: 1, 32>}, {pipeline_mode = #tpu.pipeline_mode<synchronous>, transform_indices = @transform_5, window_bounds = array<i64: 32, 64>}, {pipeline_mode = #tpu.pipeline_mode<synchronous>, transform_indices = @transform_6, window_bounds = array<i64: 1, 64>}, {pipeline_mode = #tpu.pipeline_mode<synchronous>, transform_indices = @transform_7, window_bounds = array<i64: 32, 32>}, {pipeline_mode = #tpu.pipeline_mode<synchronous>, transform_indices = @transform_8, window_bounds = array<i64: 1, 32>}, {pipeline_mode = #tpu.pipeline_mode<synchronous>, transform_indices = @transform_9, window_bounds = array<i64: 1, 32>}, {pipeline_mode = #tpu.pipeline_mode<synchronous>, transform_indices = @transform_10, window_bounds = array<i64: 1, 32>}, {pipeline_mode = #tpu.pipeline_mode<synchronous>, transform_indices = @transform_11, window_bounds = array<i64: 32, 64>}, {pipeline_mode = #tpu.pipeline_mode<synchronous>, transform_indices = @transform_12, window_bounds = array<i64: 1, 64>}, {pipeline_mode = #tpu.pipeline_mode<synchronous>, transform_indices = @transform_13, window_bounds = array<i64: 64, 32>}, {pipeline_mode = #tpu.pipeline_mode<synchronous>, transform_indices = @transform_14, window_bounds = array<i64: 1, 32>}, {transform_indices = @transform_15, window_bounds = array<i64: 1, 8, 32>}]} {
    %c0_i32 = arith.constant 0 : i32
    %0 = arith.cmpi eq, %arg1, %c0_i32 : i32
    %1 = arith.extui %0 : i1 to i32
    %c0_i32_0 = arith.constant 0 : i32
    %2 = arith.cmpi ne, %1, %c0_i32_0 : i32
    scf.if %2 {
      %c0_78 = arith.constant 0 : index
      %c0_79 = arith.constant 0 : index
      %c0_80 = arith.constant 0 : index
      %163 = vector.load %arg2[%c0_78, %c0_79, %c0_80] : memref<1x8x32xf32, #tpu.memory_space<vmem>>, vector<1x8x32xf32>
      %164 = vector.shape_cast %163 : vector<1x8x32xf32> to vector<8x32xf32>
      %c0_81 = arith.constant 0 : index
      %c0_82 = arith.constant 0 : index
      %165 = vector.load %arg3[%c0_81, %c0_82] : memref<1x32xf32, #tpu.memory_space<vmem>>, vector<1x32xf32>
      %c0_83 = arith.constant 0 : index
      %c0_84 = arith.constant 0 : index
      %166 = vector.load %arg4[%c0_83, %c0_84] : memref<1x32xf32, #tpu.memory_space<vmem>>, vector<1x32xf32>
      %cst_85 = arith.constant dense<0.000000e+00> : vector<8xf32>
      %167 = vector.multi_reduction <add>, %164, %cst_85 [1] : vector<8x32xf32> to vector<8xf32>
      %168 = vector.shape_cast %167 : vector<8xf32> to vector<8x1xf32>
      %cst_86 = arith.constant 3.200000e+01 : f32
      %169 = vector.broadcast %cst_86 : f32 to vector<8x1xf32>
      %170 = arith.divf %168, %169 : vector<8x1xf32>
      %171 = vector.broadcast %170 : vector<8x1xf32> to vector<8x32xf32>
      %172 = arith.subf %164, %171 : vector<8x32xf32>
      %173 = arith.mulf %172, %172 : vector<8x32xf32>
      %cst_87 = arith.constant dense<0.000000e+00> : vector<8xf32>
      %174 = vector.multi_reduction <add>, %173, %cst_87 [1] : vector<8x32xf32> to vector<8xf32>
      %175 = vector.shape_cast %174 : vector<8xf32> to vector<8x1xf32>
      %cst_88 = arith.constant 3.200000e+01 : f32
      %176 = vector.broadcast %cst_88 : f32 to vector<8x1xf32>
      %177 = arith.divf %175, %176 : vector<8x1xf32>
      %cst_89 = arith.constant 9.99999997E-7 : f32
      %178 = vector.broadcast %cst_89 : f32 to vector<8x1xf32>
      %179 = arith.addf %177, %178 : vector<8x1xf32>
      %180 = math.rsqrt %179 : vector<8x1xf32>
      %181 = vector.broadcast %180 : vector<8x1xf32> to vector<8x32xf32>
      %182 = arith.mulf %172, %181 : vector<8x32xf32>
      %183 = vector.broadcast %165 : vector<1x32xf32> to vector<8x32xf32>
      %184 = arith.mulf %182, %183 : vector<8x32xf32>
      %185 = vector.broadcast %166 : vector<1x32xf32> to vector<8x32xf32>
      %186 = arith.addf %184, %185 : vector<8x32xf32>
      %187 = arith.truncf %186 : vector<8x32xf32> to vector<8x32xbf16>
      %c0_90 = arith.constant 0 : index
      %c0_91 = arith.constant 0 : index
      %188 = vector.load %arg7[%c0_90, %c0_91] : memref<32x64xbf16, #tpu.memory_space<vmem>>, vector<32x64xbf16>
      %cst_92 = arith.constant dense<0.000000e+00> : vector<8x64xf32>
      %189 = tpu.matmul %187, %188, %cst_92 {dimension_numbers = #tpu.dot_dimension_numbers<[1], [0], [0], [1], [0, 0, 1, 1], [], []>} : vector<8x32xbf16>, vector<32x64xbf16>, vector<8x64xf32> -> vector<8x64xf32>
      %c0_93 = arith.constant 0 : index
      %c0_94 = arith.constant 0 : index
      %190 = vector.load %arg8[%c0_93, %c0_94] : memref<1x64xf32, #tpu.memory_space<vmem>>, vector<1x64xf32>
      %191 = vector.broadcast %190 : vector<1x64xf32> to vector<8x64xf32>
      %192 = arith.addf %189, %191 : vector<8x64xf32>
      %193 = vector.extract_strided_slice %192 {offsets = [0, 0], sizes = [8, 32], strides = [1, 1]} : vector<8x64xf32> to vector<8x32xf32>
      %194 = arith.truncf %193 : vector<8x32xf32> to vector<8x32xbf16>
      %c0_95 = arith.constant 0 : index
      %c0_96 = arith.constant 0 : index
      %195 = vector.load %arg18[%c0_95, %c0_96] : memref<8x32xbf16, #tpu.memory_space<vmem>>, vector<8x32xbf16>
      tpu.vector_store %arg18[%c0_95, %c0_96], %194 {strides = array<i32>} : memref<8x32xbf16, #tpu.memory_space<vmem>>, vector<8x32xbf16>,
      %196 = vector.extract_strided_slice %192 {offsets = [0, 32], sizes = [8, 32], strides = [1, 1]} : vector<8x64xf32> to vector<8x32xf32>
      %197 = arith.truncf %196 : vector<8x32xf32> to vector<8x32xbf16>
      %c0_97 = arith.constant 0 : index
      %c0_98 = arith.constant 0 : index
      %198 = vector.load %arg19[%c0_97, %c0_98] : memref<8x32xbf16, #tpu.memory_space<vmem>>, vector<8x32xbf16>
      tpu.vector_store %arg19[%c0_97, %c0_98], %197 {strides = array<i32>} : memref<8x32xbf16, #tpu.memory_space<vmem>>, vector<8x32xbf16>,
    } else {
    }
    %c8_i32 = arith.constant 8 : i32
    %3 = arith.muli %arg1, %c8_i32 : i32
    %4 = tpu.assume_multiple %3, 8 : i32
    %c0 = arith.constant 0 : index
    %5 = arith.index_cast %4 : i32 to index
    %c0_1 = arith.constant 0 : index
    %6 = vector.load %arg2[%c0, %5, %c0_1] : memref<1x8x32xf32, #tpu.memory_space<vmem>>, vector<1x8x32xf32>
    %7 = vector.shape_cast %6 : vector<1x8x32xf32> to vector<8x32xf32>
    %c0_2 = arith.constant 0 : index
    %c0_3 = arith.constant 0 : index
    %8 = vector.load %arg3[%c0_2, %c0_3] : memref<1x32xf32, #tpu.memory_space<vmem>>, vector<1x32xf32>
    %c0_4 = arith.constant 0 : index
    %c0_5 = arith.constant 0 : index
    %9 = vector.load %arg4[%c0_4, %c0_5] : memref<1x32xf32, #tpu.memory_space<vmem>>, vector<1x32xf32>
    %cst = arith.constant dense<0.000000e+00> : vector<8xf32>
    %10 = vector.multi_reduction <add>, %7, %cst [1] : vector<8x32xf32> to vector<8xf32>
    %11 = vector.shape_cast %10 : vector<8xf32> to vector<8x1xf32>
    %cst_6 = arith.constant 3.200000e+01 : f32
    %12 = vector.broadcast %cst_6 : f32 to vector<8x1xf32>
    %13 = arith.divf %11, %12 : vector<8x1xf32>
    %14 = vector.broadcast %13 : vector<8x1xf32> to vector<8x32xf32>
    %15 = arith.subf %7, %14 : vector<8x32xf32>
    %16 = arith.mulf %15, %15 : vector<8x32xf32>
    %cst_7 = arith.constant dense<0.000000e+00> : vector<8xf32>
    %17 = vector.multi_reduction <add>, %16, %cst_7 [1] : vector<8x32xf32> to vector<8xf32>
    %18 = vector.shape_cast %17 : vector<8xf32> to vector<8x1xf32>
    %cst_8 = arith.constant 3.200000e+01 : f32
    %19 = vector.broadcast %cst_8 : f32 to vector<8x1xf32>
    %20 = arith.divf %18, %19 : vector<8x1xf32>
    %cst_9 = arith.constant 9.99999997E-7 : f32
    %21 = vector.broadcast %cst_9 : f32 to vector<8x1xf32>
    %22 = arith.addf %20, %21 : vector<8x1xf32>
    %23 = math.rsqrt %22 : vector<8x1xf32>
    %24 = vector.broadcast %23 : vector<8x1xf32> to vector<8x32xf32>
    %25 = arith.mulf %15, %24 : vector<8x32xf32>
    %26 = vector.broadcast %8 : vector<1x32xf32> to vector<8x32xf32>
    %27 = arith.mulf %25, %26 : vector<8x32xf32>
    %28 = vector.broadcast %9 : vector<1x32xf32> to vector<8x32xf32>
    %29 = arith.addf %27, %28 : vector<8x32xf32>
    %30 = arith.truncf %29 : vector<8x32xf32> to vector<8x32xbf16>
    %c0_10 = arith.constant 0 : index
    %c0_11 = arith.constant 0 : index
    %31 = vector.load %arg5[%c0_10, %c0_11] : memref<32x32xbf16, #tpu.memory_space<vmem>>, vector<32x32xbf16>
    %cst_12 = arith.constant dense<0.000000e+00> : vector<8x32xf32>
    %32 = tpu.matmul %30, %31, %cst_12 {dimension_numbers = #tpu.dot_dimension_numbers<[1], [0], [0], [1], [0, 0, 1, 1], [], []>} : vector<8x32xbf16>, vector<32x32xbf16>, vector<8x32xf32> -> vector<8x32xf32>
    %c0_13 = arith.constant 0 : index
    %c0_14 = arith.constant 0 : index
    %33 = vector.load %arg6[%c0_13, %c0_14] : memref<1x32xf32, #tpu.memory_space<vmem>>, vector<1x32xf32>
    %34 = vector.broadcast %33 : vector<1x32xf32> to vector<8x32xf32>
    %35 = arith.addf %32, %34 : vector<8x32xf32>
    %36 = arith.truncf %35 : vector<8x32xf32> to vector<8x32xbf16>
    %37 = vector.extract_strided_slice %36 {offsets = [0, 0], sizes = [8, 8], strides = [1, 1]} : vector<8x32xbf16> to vector<8x8xbf16>
    %c0_15 = arith.constant 0 : index
    %c0_16 = arith.constant 0 : index
    %38 = vector.load %arg18[%c0_15, %c0_16] : memref<8x32xbf16, #tpu.memory_space<vmem>>, vector<8x8xbf16>
    %c0_17 = arith.constant 0 : index
    %c0_18 = arith.constant 0 : index
    %39 = vector.load %arg19[%c0_17, %c0_18] : memref<8x32xbf16, #tpu.memory_space<vmem>>, vector<8x8xbf16>
    %cst_19 = arith.constant dense<0.000000e+00> : vector<8x8xf32>
    %40 = tpu.matmul %37, %38, %cst_19 {dimension_numbers = #tpu.dot_dimension_numbers<[1], [1], [0], [0], [0, 0, 1, 0], [], []>} : vector<8x8xbf16>, vector<8x8xbf16>, vector<8x8xf32> -> vector<8x8xf32>
    %cst_20 = arith.constant 0.353553385 : f32
    %41 = vector.broadcast %cst_20 : f32 to vector<8x8xf32>
    %42 = arith.mulf %40, %41 : vector<8x8xf32>
    %cst_21 = arith.constant dense<0xFF800000> : vector<8xf32>
    %43 = vector.multi_reduction <maximumf>, %42, %cst_21 [1] : vector<8x8xf32> to vector<8xf32>
    %44 = vector.shape_cast %43 : vector<8xf32> to vector<8x1xf32>
    %45 = vector.broadcast %44 : vector<8x1xf32> to vector<8x8xf32>
    %46 = arith.subf %42, %45 : vector<8x8xf32>
    %47 = math.exp %46 : vector<8x8xf32>
    %cst_22 = arith.constant dense<0.000000e+00> : vector<8xf32>
    %48 = vector.multi_reduction <add>, %47, %cst_22 [1] : vector<8x8xf32> to vector<8xf32>
    %49 = vector.shape_cast %48 : vector<8xf32> to vector<8x1xf32>
    %50 = tpu.reciprocal %49 {approx = true} : vector<8x1xf32> -> vector<8x1xf32>
    %51 = vector.broadcast %50 : vector<8x1xf32> to vector<8x8xf32>
    %52 = arith.mulf %47, %51 : vector<8x8xf32>
    %53 = arith.truncf %52 : vector<8x8xf32> to vector<8x8xbf16>
    %cst_23 = arith.constant dense<0.000000e+00> : vector<8x8xf32>
    %54 = tpu.matmul %53, %39, %cst_23 {dimension_numbers = #tpu.dot_dimension_numbers<[1], [0], [0], [1], [0, 0, 1, 1], [], []>} : vector<8x8xbf16>, vector<8x8xbf16>, vector<8x8xf32> -> vector<8x8xf32>
    %55 = vector.extract_strided_slice %36 {offsets = [0, 8], sizes = [8, 8], strides = [1, 1]} : vector<8x32xbf16> to vector<8x8xbf16>
    %c0_24 = arith.constant 0 : index
    %c8 = arith.constant 8 : index
    %56 = vector.load %arg18[%c0_24, %c8] : memref<8x32xbf16, #tpu.memory_space<vmem>>, vector<8x8xbf16>
    %c0_25 = arith.constant 0 : index
    %c8_26 = arith.constant 8 : index
    %57 = vector.load %arg19[%c0_25, %c8_26] : memref<8x32xbf16, #tpu.memory_space<vmem>>, vector<8x8xbf16>
    %cst_27 = arith.constant dense<0.000000e+00> : vector<8x8xf32>
    %58 = tpu.matmul %55, %56, %cst_27 {dimension_numbers = #tpu.dot_dimension_numbers<[1], [1], [0], [0], [0, 0, 1, 0], [], []>} : vector<8x8xbf16>, vector<8x8xbf16>, vector<8x8xf32> -> vector<8x8xf32>
    %cst_28 = arith.constant 0.353553385 : f32
    %59 = vector.broadcast %cst_28 : f32 to vector<8x8xf32>
    %60 = arith.mulf %58, %59 : vector<8x8xf32>
    %cst_29 = arith.constant dense<0xFF800000> : vector<8xf32>
    %61 = vector.multi_reduction <maximumf>, %60, %cst_29 [1] : vector<8x8xf32> to vector<8xf32>
    %62 = vector.shape_cast %61 : vector<8xf32> to vector<8x1xf32>
    %63 = vector.broadcast %62 : vector<8x1xf32> to vector<8x8xf32>
    %64 = arith.subf %60, %63 : vector<8x8xf32>
    %65 = math.exp %64 : vector<8x8xf32>
    %cst_30 = arith.constant dense<0.000000e+00> : vector<8xf32>
    %66 = vector.multi_reduction <add>, %65, %cst_30 [1] : vector<8x8xf32> to vector<8xf32>
    %67 = vector.shape_cast %66 : vector<8xf32> to vector<8x1xf32>
    %68 = tpu.reciprocal %67 {approx = true} : vector<8x1xf32> -> vector<8x1xf32>
    %69 = vector.broadcast %68 : vector<8x1xf32> to vector<8x8xf32>
    %70 = arith.mulf %65, %69 : vector<8x8xf32>
    %71 = arith.truncf %70 : vector<8x8xf32> to vector<8x8xbf16>
    %cst_31 = arith.constant dense<0.000000e+00> : vector<8x8xf32>
    %72 = tpu.matmul %71, %57, %cst_31 {dimension_numbers = #tpu.dot_dimension_numbers<[1], [0], [0], [1], [0, 0, 1, 1], [], []>} : vector<8x8xbf16>, vector<8x8xbf16>, vector<8x8xf32> -> vector<8x8xf32>
    %73 = vector.extract_strided_slice %36 {offsets = [0, 16], sizes = [8, 8], strides = [1, 1]} : vector<8x32xbf16> to vector<8x8xbf16>
    %c0_32 = arith.constant 0 : index
    %c16 = arith.constant 16 : index
    %74 = vector.load %arg18[%c0_32, %c16] : memref<8x32xbf16, #tpu.memory_space<vmem>>, vector<8x8xbf16>
    %c0_33 = arith.constant 0 : index
    %c16_34 = arith.constant 16 : index
    %75 = vector.load %arg19[%c0_33, %c16_34] : memref<8x32xbf16, #tpu.memory_space<vmem>>, vector<8x8xbf16>
    %cst_35 = arith.constant dense<0.000000e+00> : vector<8x8xf32>
    %76 = tpu.matmul %73, %74, %cst_35 {dimension_numbers = #tpu.dot_dimension_numbers<[1], [1], [0], [0], [0, 0, 1, 0], [], []>} : vector<8x8xbf16>, vector<8x8xbf16>, vector<8x8xf32> -> vector<8x8xf32>
    %cst_36 = arith.constant 0.353553385 : f32
    %77 = vector.broadcast %cst_36 : f32 to vector<8x8xf32>
    %78 = arith.mulf %76, %77 : vector<8x8xf32>
    %cst_37 = arith.constant dense<0xFF800000> : vector<8xf32>
    %79 = vector.multi_reduction <maximumf>, %78, %cst_37 [1] : vector<8x8xf32> to vector<8xf32>
    %80 = vector.shape_cast %79 : vector<8xf32> to vector<8x1xf32>
    %81 = vector.broadcast %80 : vector<8x1xf32> to vector<8x8xf32>
    %82 = arith.subf %78, %81 : vector<8x8xf32>
    %83 = math.exp %82 : vector<8x8xf32>
    %cst_38 = arith.constant dense<0.000000e+00> : vector<8xf32>
    %84 = vector.multi_reduction <add>, %83, %cst_38 [1] : vector<8x8xf32> to vector<8xf32>
    %85 = vector.shape_cast %84 : vector<8xf32> to vector<8x1xf32>
    %86 = tpu.reciprocal %85 {approx = true} : vector<8x1xf32> -> vector<8x1xf32>
    %87 = vector.broadcast %86 : vector<8x1xf32> to vector<8x8xf32>
    %88 = arith.mulf %83, %87 : vector<8x8xf32>
    %89 = arith.truncf %88 : vector<8x8xf32> to vector<8x8xbf16>
    %cst_39 = arith.constant dense<0.000000e+00> : vector<8x8xf32>
    %90 = tpu.matmul %89, %75, %cst_39 {dimension_numbers = #tpu.dot_dimension_numbers<[1], [0], [0], [1], [0, 0, 1, 1], [], []>} : vector<8x8xbf16>, vector<8x8xbf16>, vector<8x8xf32> -> vector<8x8xf32>
    %91 = vector.extract_strided_slice %36 {offsets = [0, 24], sizes = [8, 8], strides = [1, 1]} : vector<8x32xbf16> to vector<8x8xbf16>
    %c0_40 = arith.constant 0 : index
    %c24 = arith.constant 24 : index
    %92 = vector.load %arg18[%c0_40, %c24] : memref<8x32xbf16, #tpu.memory_space<vmem>>, vector<8x8xbf16>
    %c0_41 = arith.constant 0 : index
    %c24_42 = arith.constant 24 : index
    %93 = vector.load %arg19[%c0_41, %c24_42] : memref<8x32xbf16, #tpu.memory_space<vmem>>, vector<8x8xbf16>
    %cst_43 = arith.constant dense<0.000000e+00> : vector<8x8xf32>
    %94 = tpu.matmul %91, %92, %cst_43 {dimension_numbers = #tpu.dot_dimension_numbers<[1], [1], [0], [0], [0, 0, 1, 0], [], []>} : vector<8x8xbf16>, vector<8x8xbf16>, vector<8x8xf32> -> vector<8x8xf32>
    %cst_44 = arith.constant 0.353553385 : f32
    %95 = vector.broadcast %cst_44 : f32 to vector<8x8xf32>
    %96 = arith.mulf %94, %95 : vector<8x8xf32>
    %cst_45 = arith.constant dense<0xFF800000> : vector<8xf32>
    %97 = vector.multi_reduction <maximumf>, %96, %cst_45 [1] : vector<8x8xf32> to vector<8xf32>
    %98 = vector.shape_cast %97 : vector<8xf32> to vector<8x1xf32>
    %99 = vector.broadcast %98 : vector<8x1xf32> to vector<8x8xf32>
    %100 = arith.subf %96, %99 : vector<8x8xf32>
    %101 = math.exp %100 : vector<8x8xf32>
    %cst_46 = arith.constant dense<0.000000e+00> : vector<8xf32>
    %102 = vector.multi_reduction <add>, %101, %cst_46 [1] : vector<8x8xf32> to vector<8xf32>
    %103 = vector.shape_cast %102 : vector<8xf32> to vector<8x1xf32>
    %104 = tpu.reciprocal %103 {approx = true} : vector<8x1xf32> -> vector<8x1xf32>
    %105 = vector.broadcast %104 : vector<8x1xf32> to vector<8x8xf32>
    %106 = arith.mulf %101, %105 : vector<8x8xf32>
    %107 = arith.truncf %106 : vector<8x8xf32> to vector<8x8xbf16>
    %cst_47 = arith.constant dense<0.000000e+00> : vector<8x8xf32>
    %108 = tpu.matmul %107, %93, %cst_47 {dimension_numbers = #tpu.dot_dimension_numbers<[1], [0], [0], [1], [0, 0, 1, 1], [], []>} : vector<8x8xbf16>, vector<8x8xbf16>, vector<8x8xf32> -> vector<8x8xf32>
    %109 = tpu.concatenate %54, %72, %90, %108 in 1 : vector<8x8xf32>, vector<8x8xf32>, vector<8x8xf32>, vector<8x8xf32> -> vector<8x32xf32>
    %110 = arith.truncf %109 : vector<8x32xf32> to vector<8x32xbf16>
    %c0_48 = arith.constant 0 : index
    %c0_49 = arith.constant 0 : index
    %111 = vector.load %arg9[%c0_48, %c0_49] : memref<32x32xbf16, #tpu.memory_space<vmem>>, vector<32x32xbf16>
    %cst_50 = arith.constant dense<0.000000e+00> : vector<8x32xf32>
    %112 = tpu.matmul %110, %111, %cst_50 {dimension_numbers = #tpu.dot_dimension_numbers<[1], [0], [0], [1], [0, 0, 1, 1], [], []>} : vector<8x32xbf16>, vector<32x32xbf16>, vector<8x32xf32> -> vector<8x32xf32>
    %c0_51 = arith.constant 0 : index
    %c0_52 = arith.constant 0 : index
    %113 = vector.load %arg10[%c0_51, %c0_52] : memref<1x32xf32, #tpu.memory_space<vmem>>, vector<1x32xf32>
    %114 = vector.broadcast %113 : vector<1x32xf32> to vector<8x32xf32>
    %115 = arith.addf %112, %114 : vector<8x32xf32>
    %116 = arith.addf %7, %115 : vector<8x32xf32>
    %c0_53 = arith.constant 0 : index
    %c0_54 = arith.constant 0 : index
    %117 = vector.load %arg11[%c0_53, %c0_54] : memref<1x32xf32, #tpu.memory_space<vmem>>, vector<1x32xf32>
    %c0_55 = arith.constant 0 : index
    %c0_56 = arith.constant 0 : index
    %118 = vector.load %arg12[%c0_55, %c0_56] : memref<1x32xf32, #tpu.memory_space<vmem>>, vector<1x32xf32>
    %cst_57 = arith.constant dense<0.000000e+00> : vector<8xf32>
    %119 = vector.multi_reduction <add>, %116, %cst_57 [1] : vector<8x32xf32> to vector<8xf32>
    %120 = vector.shape_cast %119 : vector<8xf32> to vector<8x1xf32>
    %cst_58 = arith.constant 3.200000e+01 : f32
    %121 = vector.broadcast %cst_58 : f32 to vector<8x1xf32>
    %122 = arith.divf %120, %121 : vector<8x1xf32>
    %123 = vector.broadcast %122 : vector<8x1xf32> to vector<8x32xf32>
    %124 = arith.subf %116, %123 : vector<8x32xf32>
    %125 = arith.mulf %124, %124 : vector<8x32xf32>
    %cst_59 = arith.constant dense<0.000000e+00> : vector<8xf32>
    %126 = vector.multi_reduction <add>, %125, %cst_59 [1] : vector<8x32xf32> to vector<8xf32>
    %127 = vector.shape_cast %126 : vector<8xf32> to vector<8x1xf32>
    %cst_60 = arith.constant 3.200000e+01 : f32
    %128 = vector.broadcast %cst_60 : f32 to vector<8x1xf32>
    %129 = arith.divf %127, %128 : vector<8x1xf32>
    %cst_61 = arith.constant 9.99999997E-7 : f32
    %130 = vector.broadcast %cst_61 : f32 to vector<8x1xf32>
    %131 = arith.addf %129, %130 : vector<8x1xf32>
    %132 = math.rsqrt %131 : vector<8x1xf32>
    %133 = vector.broadcast %132 : vector<8x1xf32> to vector<8x32xf32>
    %134 = arith.mulf %124, %133 : vector<8x32xf32>
    %135 = vector.broadcast %117 : vector<1x32xf32> to vector<8x32xf32>
    %136 = arith.mulf %134, %135 : vector<8x32xf32>
    %137 = vector.broadcast %118 : vector<1x32xf32> to vector<8x32xf32>
    %138 = arith.addf %136, %137 : vector<8x32xf32>
    %139 = arith.truncf %138 : vector<8x32xf32> to vector<8x32xbf16>
    %c0_62 = arith.constant 0 : index
    %c0_63 = arith.constant 0 : index
    %140 = vector.load %arg13[%c0_62, %c0_63] : memref<32x64xbf16, #tpu.memory_space<vmem>>, vector<32x64xbf16>
    %cst_64 = arith.constant dense<0.000000e+00> : vector<8x64xf32>
    %141 = tpu.matmul %139, %140, %cst_64 {dimension_numbers = #tpu.dot_dimension_numbers<[1], [0], [0], [1], [0, 0, 1, 1], [], []>} : vector<8x32xbf16>, vector<32x64xbf16>, vector<8x64xf32> -> vector<8x64xf32>
    %c0_65 = arith.constant 0 : index
    %c0_66 = arith.constant 0 : index
    %142 = vector.load %arg14[%c0_65, %c0_66] : memref<1x64xf32, #tpu.memory_space<vmem>>, vector<1x64xf32>
    %143 = vector.broadcast %142 : vector<1x64xf32> to vector<8x64xf32>
    %144 = arith.addf %141, %143 : vector<8x64xf32>
    %cst_67 = arith.constant 5.000000e-01 : f32
    %145 = vector.broadcast %cst_67 : f32 to vector<8x64xf32>
    %146 = arith.mulf %145, %144 : vector<8x64xf32>
    %cst_68 = arith.constant 0.707106769 : f32
    %147 = vector.broadcast %cst_68 : f32 to vector<8x64xf32>
    %148 = arith.mulf %144, %147 : vector<8x64xf32>
    %149 = math.erf %148 : vector<8x64xf32>
    %cst_69 = arith.constant 1.000000e+00 : f32
    %150 = vector.broadcast %cst_69 : f32 to vector<8x64xf32>
    %151 = arith.addf %150, %149 : vector<8x64xf32>
    %152 = arith.mulf %146, %151 : vector<8x64xf32>
    %153 = arith.truncf %152 : vector<8x64xf32> to vector<8x64xbf16>
    %c0_70 = arith.constant 0 : index
    %c0_71 = arith.constant 0 : index
    %154 = vector.load %arg15[%c0_70, %c0_71] : memref<64x32xbf16, #tpu.memory_space<vmem>>, vector<64x32xbf16>
    %cst_72 = arith.constant dense<0.000000e+00> : vector<8x32xf32>
    %155 = tpu.matmul %153, %154, %cst_72 {dimension_numbers = #tpu.dot_dimension_numbers<[1], [0], [0], [1], [0, 0, 1, 1], [], []>} : vector<8x64xbf16>, vector<64x32xbf16>, vector<8x32xf32> -> vector<8x32xf32>
    %c0_73 = arith.constant 0 : index
    %c0_74 = arith.constant 0 : index
    %156 = vector.load %arg16[%c0_73, %c0_74] : memref<1x32xf32, #tpu.memory_space<vmem>>, vector<1x32xf32>
    %157 = vector.broadcast %156 : vector<1x32xf32> to vector<8x32xf32>
    %158 = arith.addf %155, %157 : vector<8x32xf32>
    %159 = arith.addf %116, %158 : vector<8x32xf32>
    %c0_75 = arith.constant 0 : index
    %c0_76 = arith.constant 0 : index
    %c0_77 = arith.constant 0 : index
    %160 = vector.load %arg17[%c0_75, %c0_76, %c0_77] : memref<1x8x32xf32, #tpu.memory_space<vmem>>, vector<1x8x32xf32>
    %161 = vector.shape_cast %160 : vector<1x8x32xf32> to vector<8x32xf32>
    %162 = vector.shape_cast %159 : vector<8x32xf32> to vector<1x8x32xf32>
    tpu.vector_store %arg17[%c0_75, %c0_76, %c0_77], %162 {strides = array<i32>} : memref<1x8x32xf32, #tpu.memory_space<vmem>>, vector<1x8x32xf32>,
    return
  }
  func.func @transform_0(%arg0: i32, %arg1: i32) -> (i32, i32, i32) {
    %c0_i32 = arith.constant 0 : i32
    %c0_i32_0 = arith.constant 0 : i32
    %c0_i32_1 = arith.constant 0 : i32
    return %arg0, %c0_i32, %c0_i32_0 : i32, i32, i32
  }
  func.func @transform_1(%arg0: i32, %arg1: i32) -> (i32, i32) {
    %c0_i32 = arith.constant 0 : i32
    %c0_i32_0 = arith.constant 0 : i32
    %c0_i32_1 = arith.constant 0 : i32
    return %c0_i32, %c0_i32_0 : i32, i32
  }
  func.func @transform_2(%arg0: i32, %arg1: i32) -> (i32, i32) {
    %c0_i32 = arith.constant 0 : i32
    %c0_i32_0 = arith.constant 0 : i32
    %c0_i32_1 = arith.constant 0 : i32
    return %c0_i32, %c0_i32_0 : i32, i32
  }
  func.func @transform_3(%arg0: i32, %arg1: i32) -> (i32, i32) {
    %c0_i32 = arith.constant 0 : i32
    %c0_i32_0 = arith.constant 0 : i32
    %c0_i32_1 = arith.constant 0 : i32
    return %c0_i32, %c0_i32_0 : i32, i32
  }
  func.func @transform_4(%arg0: i32, %arg1: i32) -> (i32, i32) {
    %c0_i32 = arith.constant 0 : i32
    %c0_i32_0 = arith.constant 0 : i32
    %c0_i32_1 = arith.constant 0 : i32
    return %c0_i32, %c0_i32_0 : i32, i32
  }
  func.func @transform_5(%arg0: i32, %arg1: i32) -> (i32, i32) {
    %c0_i32 = arith.constant 0 : i32
    %c0_i32_0 = arith.constant 0 : i32
    %c0_i32_1 = arith.constant 0 : i32
    return %c0_i32, %c0_i32_0 : i32, i32
  }
  func.func @transform_6(%arg0: i32, %arg1: i32) -> (i32, i32) {
    %c0_i32 = arith.constant 0 : i32
    %c0_i32_0 = arith.constant 0 : i32
    %c0_i32_1 = arith.constant 0 : i32
    return %c0_i32, %c0_i32_0 : i32, i32
  }
  func.func @transform_7(%arg0: i32, %arg1: i32) -> (i32, i32) {
    %c0_i32 = arith.constant 0 : i32
    %c0_i32_0 = arith.constant 0 : i32
    %c0_i32_1 = arith.constant 0 : i32
    return %c0_i32, %c0_i32_0 : i32, i32
  }
  func.func @transform_8(%arg0: i32, %arg1: i32) -> (i32, i32) {
    %c0_i32 = arith.constant 0 : i32
    %c0_i32_0 = arith.constant 0 : i32
    %c0_i32_1 = arith.constant 0 : i32
    return %c0_i32, %c0_i32_0 : i32, i32
  }
  func.func @transform_9(%arg0: i32, %arg1: i32) -> (i32, i32) {
    %c0_i32 = arith.constant 0 : i32
    %c0_i32_0 = arith.constant 0 : i32
    %c0_i32_1 = arith.constant 0 : i32
    return %c0_i32, %c0_i32_0 : i32, i32
  }
  func.func @transform_10(%arg0: i32, %arg1: i32) -> (i32, i32) {
    %c0_i32 = arith.constant 0 : i32
    %c0_i32_0 = arith.constant 0 : i32
    %c0_i32_1 = arith.constant 0 : i32
    return %c0_i32, %c0_i32_0 : i32, i32
  }
  func.func @transform_11(%arg0: i32, %arg1: i32) -> (i32, i32) {
    %c0_i32 = arith.constant 0 : i32
    %c0_i32_0 = arith.constant 0 : i32
    %c0_i32_1 = arith.constant 0 : i32
    return %c0_i32, %c0_i32_0 : i32, i32
  }
  func.func @transform_12(%arg0: i32, %arg1: i32) -> (i32, i32) {
    %c0_i32 = arith.constant 0 : i32
    %c0_i32_0 = arith.constant 0 : i32
    %c0_i32_1 = arith.constant 0 : i32
    return %c0_i32, %c0_i32_0 : i32, i32
  }
  func.func @transform_13(%arg0: i32, %arg1: i32) -> (i32, i32) {
    %c0_i32 = arith.constant 0 : i32
    %c0_i32_0 = arith.constant 0 : i32
    %c0_i32_1 = arith.constant 0 : i32
    return %c0_i32, %c0_i32_0 : i32, i32
  }
  func.func @transform_14(%arg0: i32, %arg1: i32) -> (i32, i32) {
    %c0_i32 = arith.constant 0 : i32
    %c0_i32_0 = arith.constant 0 : i32
    %c0_i32_1 = arith.constant 0 : i32
    return %c0_i32, %c0_i32_0 : i32, i32
  }
  func.func @transform_15(%arg0: i32, %arg1: i32) -> (i32, i32, i32) {
    %c0_i32 = arith.constant 0 : i32
    %c0_i32_0 = arith.constant 0 : i32
    return %arg0, %arg1, %c0_i32 : i32, i32, i32
  }
}

</mosaic_0001>

<llo_original>
// kernel: tpu_custom_call.1
$region0: #{tpu_custom_call.1}
  #allocation0 [shape = 'u32[]', space=smem, size = 0x4, offset = 0x4, fixed_abs, tag = 'smem constant byte address 0x4 - core index']
  #allocation1 [shape = 'u32[144,128]{1,0:T(1,128)}', space=vmem, size = 0x12000, scoped, tag = 'internal scratch']
  #allocation2 [shape = 'bf16[8,32]{1,0:T(8,128)(2,1)}', space=vmem, size = 0x800, scoped, tag = 'scratch operand']
  #allocation3 [shape = 'bf16[8,32]{1,0:T(8,128)(2,1)}', space=vmem, size = 0x800, scoped, tag = 'scratch operand']
  %s0 = inlined_call_operand.vmem [shape: f32[2,8,32], index: 0, kind: input, shape index: {}]
  %s1 = inlined_call_operand.vmem [shape: f32[1,32], index: 1, kind: input, shape index: {}]
  %s2 = inlined_call_operand.vmem [shape: f32[1,32], index: 2, kind: input, shape index: {}]
  %s3 = inlined_call_operand.vmem [shape: bf16[32,32], index: 3, kind: input, shape index: {}]
  %s4 = inlined_call_operand.hbm [shape: f32[1,32], index: 4, kind: input, shape index: {}]
  %s5 = inlined_call_operand.vmem [shape: bf16[32,64], index: 5, kind: input, shape index: {}]
  %s6 = inlined_call_operand.hbm [shape: f32[1,64], index: 6, kind: input, shape index: {}]
  %s7 = inlined_call_operand.hbm [shape: bf16[32,32], index: 7, kind: input, shape index: {}]
  %s8 = inlined_call_operand.hbm [shape: f32[1,32], index: 8, kind: input, shape index: {}]
  %s9 = inlined_call_operand.hbm [shape: f32[1,32], index: 9, kind: input, shape index: {}]
  %s10 = inlined_call_operand.vmem [shape: f32[1,32], index: 10, kind: input, shape index: {}]
  %s11 = inlined_call_operand.vmem [shape: bf16[32,64], index: 11, kind: input, shape index: {}]
  %s12 = inlined_call_operand.vmem [shape: f32[1,64], index: 12, kind: input, shape index: {}]
  %s13 = inlined_call_operand.vmem [shape: bf16[64,32], index: 13, kind: input, shape index: {}]
  %s14 = inlined_call_operand.vmem [shape: f32[1,32], index: 14, kind: input, shape index: {}]
  %s15 = inlined_call_operand.hbm [shape: f32[2,8,32], index: 15, kind: output, shape index: {}]
  %s16 = sld [smem:[#allocation0]]
  $region117: #{tpu_custom_call.1} parent=0
    _
  %s18 = ssub.s32 1, %s16
  %s19 = scalar_select 0, %s18, %s16
  $region1: #{tpu_custom_call.1} parent=0
    #allocation4 [shape = 'u8[512]{0}', space=vmem, size = 0x400, scoped, tag = 'input window, operand 4, single buffered']
    #allocation5 [shape = 's32[2]{0}', space=sflag, size = 0x8, scoped, tag = 'scoped memory for tpu_custom_call.1']
    #allocation6 [shape = 's32[2]{0}', space=sflag, size = 0x8, scoped, tag = 'scoped memory for tpu_custom_call.1']
    #allocation7 [shape = 'u8[512]{0}', space=vmem, size = 0x400, scoped, tag = 'input window, operand 6, single buffered']
    #allocation8 [shape = 's32[1]{0}', space=sflag, size = 0x4, scoped, tag = 'scoped memory for tpu_custom_call.1']
    #allocation9 [shape = 'u8[8192]{0}', space=vmem, size = 0x2000, scoped, tag = 'input window, operand 7, single buffered']
    #allocation10 [shape = 'u8[512]{0}', space=vmem, size = 0x400, scoped, tag = 'input window, operand 8, single buffered']
    #allocation11 [shape = 's32[1]{0}', space=sflag, size = 0x4, scoped, tag = 'scoped memory for tpu_custom_call.1']
    #allocation12 [shape = 'u8[512]{0}', space=vmem, size = 0x400, scoped, tag = 'input window, operand 9, single buffered']
    #allocation13 [shape = 'u8[8192]{0}', space=vmem, size = 0x2000, scoped, tag = 'output window, operand 0']
    %20 = vsyncpa [#allocation5], 0
    %21 = vsyncpa [#allocation8], 0
    %22 = vsyncpa [#allocation11], 0
    %23 = vsyncpa [#allocation6], 0
    %s24 = scalar_lea.sflag [#allocation6], 1
    %25 = vsyncpa %s24, 0
    loop: start=0, step=1, limit=4
    $region2: #{tpu_custom_call.1} parent=1 // loop_pre_header
      _
    $region3: #{tpu_custom_call.1} parent=1 // loop_header
      %s27 = sphi 0, %s31
      %p28 = scmp.ge.s32.totalorder %s27, 4
      %s34 = sphi 0, %s46
      %s35 = sphi 0, %s42
      %s36 = sphi 0, %s34
      %s37 = sphi 0, %s35
      %s38 = sphi 0, %s36
      %s39 = sphi 0, %s37
      %s49 = sphi 0, %s51
      %s52 = sphi 0, %s49
      %s53 = sphi 0, %s52
      %s69 = sphi 0, %s53
      %s73 = sphi 0, %s73
      %s75 = sphi 0, %s73
      %s76 = sphi 0, %s75
      %s90 = sphi 0, %s76
      %s94 = sphi 0, %s94
      %s96 = sphi 0, %s94
      %s97 = sphi 0, %s96
      %s111 = sphi 0, %s97
      %s115 = sphi 0, %s115
      %s117 = sphi 0, %s115
      %s118 = sphi 0, %s117
      %s132 = sphi 0, %s118
      %s136 = sphi 0, %s136
      %s138 = sphi 0, %s136
      %s139 = sphi 0, %s138
      %s153 = sphi 0, %s139
      %s157 = sphi 0, %s157
      %s159 = sphi 0, %s157
      %s160 = sphi 0, %s159
      %s174 = sphi 0, %s160
      %s178 = sphi 0, %s178
      %s180 = sphi 0, %s178
      %s181 = sphi 0, %s180
      %s195 = sphi 0, %s181
      %s199 = sphi 0, %s199
      %s201 = sphi 0, %s199
      %s202 = sphi 0, %s201
      %s216 = sphi 0, %s202
      %s220 = sphi 0, %s220
      %s222 = sphi 0, %s220
      %s223 = sphi 0, %s222
      %s237 = sphi 0, %s223
      %s241 = sphi 0, %s241
      %s243 = sphi 0, %s241
      %s244 = sphi 0, %s243
      %s258 = sphi 0, %s244
      %s262 = sphi 0, %s262
      %s264 = sphi 0, %s262
      %s265 = sphi 0, %s264
      %s279 = sphi 0, %s265
      %s283 = sphi 0, %s283
      %s285 = sphi 0, %s283
      %s286 = sphi 0, %s285
      %s300 = sphi 0, %s286
      %s304 = sphi 0, %s304
      %s306 = sphi 0, %s304
      %s307 = sphi 0, %s306
      %s321 = sphi 0, %s307
      %s325 = sphi 0, %s325
      %s327 = sphi 0, %s325
      %s328 = sphi 0, %s327
      %s342 = sphi 0, %s328
      %s346 = sphi 0, %s346
      %s348 = sphi 0, %s346
      %s349 = sphi 0, %s348
      %s363 = sphi 0, %s349
      %s371 = sphi 0, %s373
      %s374 = sphi 0, %s371
      %s375 = sphi 0, %s374
      %s391 = sphi 0, %s375
    $region4: #{tpu_custom_call.1} parent=1 // loop_header_branch
      %30 = sbr.rel (%p28) target = $region8
    $region5: #{tpu_custom_call.1} parent=1 // loop_body
      %s32 = ssub.s32 %s27, 1
      %s33 = ssub.s32 %s27, 2
      %s40 = sadd.s32 1, %s35
      %p41 = scmp.ge.s32.totalorder %s40, 1
      %s42 = scalar_select %p41, 0, %s40
      %s43 = sadd.s32 1, %s34
      %s44 = scalar_select %p41, %s43, %s34
      %p45 = scmp.ge.s32.totalorder %s44, 2
      %s46 = scalar_select %p45, 0, %s44
      %s47 = ssub.s32 %s34, %s46
      %p48 = scmp.eq.s32.totalorder %s47, 0
      %s50 = sadd.s32 %s49, 1
      %s51 = scalar_select %p48, %s49, %s50
      %p54 = pneg %p48
      %p55 = scmp.eq.s32.totalorder %s27, 1
      %p56 = por %p54, %p55
      %p57 = scmp.ne.s32.totalorder %s49, %s52
      %p58 = scmp.eq.s32.totalorder %s27, 0
      %p59 = por %p57, %p58
      %p60 = scmp.ne.s32.totalorder %s49, %s52
      %p61 = scmp.eq.s32.totalorder %s32, 1
      %p62 = por %p60, %p61
      %p63 = scmp.ne.s32.totalorder %s52, %s53
      %p64 = scmp.eq.s32.totalorder %s32, 0
      %p65 = por %p63, %p64
      %p66 = scmp.ne.s32.totalorder %s52, %s53
      %p67 = scmp.eq.s32.totalorder %s33, 1
      %p68 = por %p66, %p67
      %p70 = scmp.ne.s32.totalorder %s53, %s69
      %p71 = scmp.eq.s32.totalorder %s33, 0
      %p72 = por %p70, %p71
      %s74 = sadd.s32 %s73, 1
      %p77 = scmp.eq.s32.totalorder %s27, 1
      %p78 = scmp.ne.s32.totalorder %s73, %s75
      %p79 = scmp.eq.s32.totalorder %s27, 0
      %p80 = por %p78, %p79
      %p81 = scmp.ne.s32.totalorder %s73, %s75
      %p82 = scmp.eq.s32.totalorder %s32, 1
      %p83 = por %p81, %p82
      %p84 = scmp.ne.s32.totalorder %s75, %s76
      %p85 = scmp.eq.s32.totalorder %s32, 0
      %p86 = por %p84, %p85
      %p87 = scmp.ne.s32.totalorder %s75, %s76
      %p88 = scmp.eq.s32.totalorder %s33, 1
      %p89 = por %p87, %p88
      %p91 = scmp.ne.s32.totalorder %s76, %s90
      %p92 = scmp.eq.s32.totalorder %s33, 0
      %p93 = por %p91, %p92
      %s95 = sadd.s32 %s94, 1
      %p98 = scmp.eq.s32.totalorder %s27, 1
      %p99 = scmp.ne.s32.totalorder %s94, %s96
      %p100 = scmp.eq.s32.totalorder %s27, 0
      %p101 = por %p99, %p100
      %p102 = scmp.ne.s32.totalorder %s94, %s96
      %p103 = scmp.eq.s32.totalorder %s32, 1
      %p104 = por %p102, %p103
      %p105 = scmp.ne.s32.totalorder %s96, %s97
      %p106 = scmp.eq.s32.totalorder %s32, 0
      %p107 = por %p105, %p106
      %p108 = scmp.ne.s32.totalorder %s96, %s97
      %p109 = scmp.eq.s32.totalorder %s33, 1
      %p110 = por %p108, %p109
      %p112 = scmp.ne.s32.totalorder %s97, %s111
      %p113 = scmp.eq.s32.totalorder %s33, 0
      %p114 = por %p112, %p113
      %s116 = sadd.s32 %s115, 1
      %p119 = scmp.eq.s32.totalorder %s27, 1
      %p120 = scmp.ne.s32.totalorder %s115, %s117
      %p121 = scmp.eq.s32.totalorder %s27, 0
      %p122 = por %p120, %p121
      %p123 = scmp.ne.s32.totalorder %s115, %s117
      %p124 = scmp.eq.s32.totalorder %s32, 1
      %p125 = por %p123, %p124
      %p126 = scmp.ne.s32.totalorder %s117, %s118
      %p127 = scmp.eq.s32.totalorder %s32, 0
      %p128 = por %p126, %p127
      %p129 = scmp.ne.s32.totalorder %s117, %s118
      %p130 = scmp.eq.s32.totalorder %s33, 1
      %p131 = por %p129, %p130
      %p133 = scmp.ne.s32.totalorder %s118, %s132
      %p134 = scmp.eq.s32.totalorder %s33, 0
      %p135 = por %p133, %p134
      %s137 = sadd.s32 %s136, 1
      %p140 = scmp.eq.s32.totalorder %s27, 1
      %p141 = scmp.ne.s32.totalorder %s136, %s138
      %p142 = scmp.eq.s32.totalorder %s27, 0
      %p143 = por %p141, %p142
      %p144 = scmp.ne.s32.totalorder %s136, %s138
      %p145 = scmp.eq.s32.totalorder %s32, 1
      %p146 = por %p144, %p145
      %p147 = scmp.ne.s32.totalorder %s138, %s139
      %p148 = scmp.eq.s32.totalorder %s32, 0
      %p149 = por %p147, %p148
      %p150 = scmp.ne.s32.totalorder %s138, %s139
      %p151 = scmp.eq.s32.totalorder %s33, 1
      %p152 = por %p150, %p151
      %p154 = scmp.ne.s32.totalorder %s139, %s153
      %p155 = scmp.eq.s32.totalorder %s33, 0
      %p156 = por %p154, %p155
      %s158 = sadd.s32 %s157, 1
      %p161 = scmp.eq.s32.totalorder %s27, 1
      %p162 = scmp.ne.s32.totalorder %s157, %s159
      %p163 = scmp.eq.s32.totalorder %s27, 0
      %p164 = por %p162, %p163
      %p165 = scmp.ne.s32.totalorder %s157, %s159
      %p166 = scmp.eq.s32.totalorder %s32, 1
      %p167 = por %p165, %p166
      %p168 = scmp.ne.s32.totalorder %s159, %s160
      %p169 = scmp.eq.s32.totalorder %s32, 0
      %p170 = por %p168, %p169
      %p171 = scmp.ne.s32.totalorder %s159, %s160
      %p172 = scmp.eq.s32.totalorder %s33, 1
      %p173 = por %p171, %p172
      %p175 = scmp.ne.s32.totalorder %s160, %s174
      %p176 = scmp.eq.s32.totalorder %s33, 0
      %p177 = por %p175, %p176
      %s179 = sadd.s32 %s178, 1
      %p182 = scmp.eq.s32.totalorder %s27, 1
      %p183 = scmp.ne.s32.totalorder %s178, %s180
      %p184 = scmp.eq.s32.totalorder %s27, 0
      %p185 = por %p183, %p184
      %p186 = scmp.ne.s32.totalorder %s178, %s180
      %p187 = scmp.eq.s32.totalorder %s32, 1
      %p188 = por %p186, %p187
      %p189 = scmp.ne.s32.totalorder %s180, %s181
      %p190 = scmp.eq.s32.totalorder %s32, 0
      %p191 = por %p189, %p190
      %p192 = scmp.ne.s32.totalorder %s180, %s181
      %p193 = scmp.eq.s32.totalorder %s33, 1
      %p194 = por %p192, %p193
      %p196 = scmp.ne.s32.totalorder %s181, %s195
      %p197 = scmp.eq.s32.totalorder %s33, 0
      %p198 = por %p196, %p197
      %s200 = sadd.s32 %s199, 1
      %p203 = scmp.eq.s32.totalorder %s27, 1
      %p204 = scmp.ne.s32.totalorder %s199, %s201
      %p205 = scmp.eq.s32.totalorder %s27, 0
      %p206 = por %p204, %p205
      %p207 = scmp.ne.s32.totalorder %s199, %s201
      %p208 = scmp.eq.s32.totalorder %s32, 1
      %p209 = por %p207, %p208
      %p210 = scmp.ne.s32.totalorder %s201, %s202
      %p211 = scmp.eq.s32.totalorder %s32, 0
      %p212 = por %p210, %p211
      %p213 = scmp.ne.s32.totalorder %s201, %s202
      %p214 = scmp.eq.s32.totalorder %s33, 1
      %p215 = por %p213, %p214
      %p217 = scmp.ne.s32.totalorder %s202, %s216
      %p218 = scmp.eq.s32.totalorder %s33, 0
      %p219 = por %p217, %p218
      %s221 = sadd.s32 %s220, 1
      %p224 = scmp.eq.s32.totalorder %s27, 1
      %p225 = scmp.ne.s32.totalorder %s220, %s222
      %p226 = scmp.eq.s32.totalorder %s27, 0
      %p227 = por %p225, %p226
      %p228 = scmp.ne.s32.totalorder %s220, %s222
      %p229 = scmp.eq.s32.totalorder %s32, 1
      %p230 = por %p228, %p229
      %p231 = scmp.ne.s32.totalorder %s222, %s223
      %p232 = scmp.eq.s32.totalorder %s32, 0
      %p233 = por %p231, %p232
      %p234 = scmp.ne.s32.totalorder %s222, %s223
      %p235 = scmp.eq.s32.totalorder %s33, 1
      %p236 = por %p234, %p235
      %p238 = scmp.ne.s32.totalorder %s223, %s237
      %p239 = scmp.eq.s32.totalorder %s33, 0
      %p240 = por %p238, %p239
      %s242 = sadd.s32 %s241, 1
      %p245 = scmp.eq.s32.totalorder %s27, 1
      %p246 = scmp.ne.s32.totalorder %s241, %s243
      %p247 = scmp.eq.s32.totalorder %s27, 0
      %p248 = por %p246, %p247
      %p249 = scmp.ne.s32.totalorder %s241, %s243
      %p250 = scmp.eq.s32.totalorder %s32, 1
      %p251 = por %p249, %p250
      %p252 = scmp.ne.s32.totalorder %s243, %s244
      %p253 = scmp.eq.s32.totalorder %s32, 0
      %p254 = por %p252, %p253
      %p255 = scmp.ne.s32.totalorder %s243, %s244
      %p256 = scmp.eq.s32.totalorder %s33, 1
      %p257 = por %p255, %p256
      %p259 = scmp.ne.s32.totalorder %s244, %s258
      %p260 = scmp.eq.s32.totalorder %s33, 0
      %p261 = por %p259, %p260
      %s263 = sadd.s32 %s262, 1
      %p266 = scmp.eq.s32.totalorder %s27, 1
      %p267 = scmp.ne.s32.totalorder %s262, %s264
      %p268 = scmp.eq.s32.totalorder %s27, 0
      %p269 = por %p267, %p268
      %p270 = scmp.ne.s32.totalorder %s262, %s264
      %p271 = scmp.eq.s32.totalorder %s32, 1
      %p272 = por %p270, %p271
      %p273 = scmp.ne.s32.totalorder %s264, %s265
      %p274 = scmp.eq.s32.totalorder %s32, 0
      %p275 = por %p273, %p274
      %p276 = scmp.ne.s32.totalorder %s264, %s265
      %p277 = scmp.eq.s32.totalorder %s33, 1
      %p278 = por %p276, %p277
      %p280 = scmp.ne.s32.totalorder %s265, %s279
      %p281 = scmp.eq.s32.totalorder %s33, 0
      %p282 = por %p280, %p281
      %s284 = sadd.s32 %s283, 1
      %p287 = scmp.eq.s32.totalorder %s27, 1
      %p288 = scmp.ne.s32.totalorder %s283, %s285
      %p289 = scmp.eq.s32.totalorder %s27, 0
      %p290 = por %p288, %p289
      %p291 = scmp.ne.s32.totalorder %s283, %s285
      %p292 = scmp.eq.s32.totalorder %s32, 1
      %p293 = por %p291, %p292
      %p294 = scmp.ne.s32.totalorder %s285, %s286
      %p295 = scmp.eq.s32.totalorder %s32, 0
      %p296 = por %p294, %p295
      %p297 = scmp.ne.s32.totalorder %s285, %s286
      %p298 = scmp.eq.s32.totalorder %s33, 1
      %p299 = por %p297, %p298
      %p301 = scmp.ne.s32.totalorder %s286, %s300
      %p302 = scmp.eq.s32.totalorder %s33, 0
      %p303 = por %p301, %p302
      %s305 = sadd.s32 %s304, 1
      %p308 = scmp.eq.s32.totalorder %s27, 1
      %p309 = scmp.ne.s32.totalorder %s304, %s306
      %p310 = scmp.eq.s32.totalorder %s27, 0
      %p311 = por %p309, %p310
      %p312 = scmp.ne.s32.totalorder %s304, %s306
      %p313 = scmp.eq.s32.totalorder %s32, 1
      %p314 = por %p312, %p313
      %p315 = scmp.ne.s32.totalorder %s306, %s307
      %p316 = scmp.eq.s32.totalorder %s32, 0
      %p317 = por %p315, %p316
      %p318 = scmp.ne.s32.totalorder %s306, %s307
      %p319 = scmp.eq.s32.totalorder %s33, 1
      %p320 = por %p318, %p319
      %p322 = scmp.ne.s32.totalorder %s307, %s321
      %p323 = scmp.eq.s32.totalorder %s33, 0
      %p324 = por %p322, %p323
      %s326 = sadd.s32 %s325, 1
      %p329 = scmp.eq.s32.totalorder %s27, 1
      %p330 = scmp.ne.s32.totalorder %s325, %s327
      %p331 = scmp.eq.s32.totalorder %s27, 0
      %p332 = por %p330, %p331
      %p333 = scmp.ne.s32.totalorder %s325, %s327
      %p334 = scmp.eq.s32.totalorder %s32, 1
      %p335 = por %p333, %p334
      %p336 = scmp.ne.s32.totalorder %s327, %s328
      %p337 = scmp.eq.s32.totalorder %s32, 0
      %p338 = por %p336, %p337
      %p339 = scmp.ne.s32.totalorder %s327, %s328
      %p340 = scmp.eq.s32.totalorder %s33, 1
      %p341 = por %p339, %p340
      %p343 = scmp.ne.s32.totalorder %s328, %s342
      %p344 = scmp.eq.s32.totalorder %s33, 0
      %p345 = por %p343, %p344
      %s347 = sadd.s32 %s346, 1
      %p350 = scmp.eq.s32.totalorder %s27, 1
      %p351 = scmp.ne.s32.totalorder %s346, %s348
      %p352 = scmp.eq.s32.totalorder %s27, 0
      %p353 = por %p351, %p352
      %p354 = scmp.ne.s32.totalorder %s346, %s348
      %p355 = scmp.eq.s32.totalorder %s32, 1
      %p356 = por %p354, %p355
      %p357 = scmp.ne.s32.totalorder %s348, %s349
      %p358 = scmp.eq.s32.totalorder %s32, 0
      %p359 = por %p357, %p358
      %p360 = scmp.ne.s32.totalorder %s348, %s349
      %p361 = scmp.eq.s32.totalorder %s33, 1
      %p362 = por %p360, %p361
      %p364 = scmp.ne.s32.totalorder %s349, %s363
      %p365 = scmp.eq.s32.totalorder %s33, 0
      %p366 = por %p364, %p365
      %s367 = ssub.s32 %s34, %s46
      %s368 = ssub.s32 %s35, %s42
      %s369 = sor.u32 %s367, %s368
      %p370 = scmp.eq.s32.totalorder %s369, 0
      %s372 = sadd.s32 %s371, 1
      %s373 = scalar_select %p370, %s371, %s372
      %p376 = pneg %p370
      %p377 = scmp.eq.s32.totalorder %s27, 1
      %p378 = por %p376, %p377
      %p379 = scmp.ne.s32.totalorder %s371, %s374
      %p380 = scmp.eq.s32.totalorder %s27, 0
      %p381 = por %p379, %p380
      %p382 = scmp.ne.s32.totalorder %s371, %s374
      %p383 = scmp.eq.s32.totalorder %s32, 1
      %p384 = por %p382, %p383
      %p385 = scmp.ne.s32.totalorder %s374, %s375
      %p386 = scmp.eq.s32.totalorder %s32, 0
      %p387 = por %p385, %p386
      %p388 = scmp.ne.s32.totalorder %s374, %s375
      %p389 = scmp.eq.s32.totalorder %s33, 1
      %p390 = por %p388, %p389
      %p392 = scmp.ne.s32.totalorder %s375, %s391
      %p393 = scmp.eq.s32.totalorder %s33, 0
      %p394 = por %p392, %p393
      %p395 = scmp.le.s32.totalorder 1, %s27
      %p396 = scmp.lt.s32.totalorder %s27, 3
      %p397 = pnand %p395, %p396
      %p398 = pneg %p397
      // Predicated region
      $region9: #{tpu_custom_call.1} parent=5 // pred_check
        _
      $region10: #{tpu_custom_call.1} parent=5 // pred_check_branch
        %400 = sbr.rel (%p397) target = $region12
      $region11: #{tpu_custom_call.1} parent=5 // pred_region
        %s401 = ssub.s32 %s27, 1
        // Predicated region
        $region13: #{tpu_custom_call.1} parent=11 // pred_check
          %p402 = pneg %p86
        $region14: #{tpu_custom_call.1} parent=11 // pred_check_branch
          %404 = sbr.rel (%p402) target = $region16
        $region15: #{tpu_custom_call.1} parent=11 // pred_region
          _
        $region16: #{tpu_custom_call.1} parent=11 // pred_fallthru
          _
        // Predicated region
        $region17: #{tpu_custom_call.1} parent=11 // pred_check
          %p405 = pneg %p107
        $region18: #{tpu_custom_call.1} parent=11 // pred_check_branch
          %407 = sbr.rel (%p405) target = $region20
        $region19: #{tpu_custom_call.1} parent=11 // pred_region
          _
        $region20: #{tpu_custom_call.1} parent=11 // pred_fallthru
          _
        // Predicated region
        $region21: #{tpu_custom_call.1} parent=11 // pred_check
          %p408 = pneg %p128
        $region22: #{tpu_custom_call.1} parent=11 // pred_check_branch
          %410 = sbr.rel (%p408) target = $region24
        $region23: #{tpu_custom_call.1} parent=11 // pred_region
          _
        $region24: #{tpu_custom_call.1} parent=11 // pred_fallthru
          _
        // Predicated region
        $region25: #{tpu_custom_call.1} parent=11 // pred_check
          %p411 = pneg %p149
        $region26: #{tpu_custom_call.1} parent=11 // pred_check_branch
          %413 = sbr.rel (%p411) target = $region28
        $region27: #{tpu_custom_call.1} parent=11 // pred_region
          %s415 = ssub.s32 16, 16
          %416 = vsyncadd [#allocation5], %s415
          %s418 = sshll.u32 [#allocation4], 4
          %s419 = int_to_ptr.vmem [resolvable:$true] %s418
          %421 = dma.hbm_to_vmem [thread:$0]  %s4, 16, %s419, [#allocation5]
        $region28: #{tpu_custom_call.1} parent=11 // pred_fallthru
          _
        // Predicated region
        $region29: #{tpu_custom_call.1} parent=11 // pred_check
          %p422 = pneg %p170
        $region30: #{tpu_custom_call.1} parent=11 // pred_check_branch
          %424 = sbr.rel (%p422) target = $region32
        $region31: #{tpu_custom_call.1} parent=11 // pred_region
          _
        $region32: #{tpu_custom_call.1} parent=11 // pred_fallthru
          _
        // Predicated region
        $region33: #{tpu_custom_call.1} parent=11 // pred_check
          %p425 = pneg %p191
        $region34: #{tpu_custom_call.1} parent=11 // pred_check_branch
          %427 = sbr.rel (%p425) target = $region36
        $region35: #{tpu_custom_call.1} parent=11 // pred_region
          %s429 = ssub.s32 16, 16
          %430 = vsyncadd [#allocation8], %s429
          %s432 = sshll.u32 [#allocation7], 4
          %s433 = int_to_ptr.vmem [resolvable:$true] %s432
          %435 = dma.hbm_to_vmem [thread:$0]  %s6, 16, %s433, [#allocation8]
        $region36: #{tpu_custom_call.1} parent=11 // pred_fallthru
          _
        // Predicated region
        $region37: #{tpu_custom_call.1} parent=11 // pred_check
          %p436 = pneg %p212
        $region38: #{tpu_custom_call.1} parent=11 // pred_check_branch
          %438 = sbr.rel (%p436) target = $region40
        $region39: #{tpu_custom_call.1} parent=11 // pred_region
          %s440 = ssub.s32 256, 256
          %441 = vsyncadd [#allocation8], %s440
          %s442 = sshll.u32 [#allocation9], 4
          %s443 = int_to_ptr.vmem [resolvable:$true] %s442
          %448 = dma.hbm_to_vmem [thread:$0]  %s7, 256, %s443, [#allocation8], 64, 64, 4
        $region40: #{tpu_custom_call.1} parent=11 // pred_fallthru
          _
        // Predicated region
        $region41: #{tpu_custom_call.1} parent=11 // pred_check
          %p449 = pneg %p233
        $region42: #{tpu_custom_call.1} parent=11 // pred_check_branch
          %451 = sbr.rel (%p449) target = $region44
        $region43: #{tpu_custom_call.1} parent=11 // pred_region
          %s453 = ssub.s32 16, 16
          %454 = vsyncadd [#allocation11], %s453
          %s456 = sshll.u32 [#allocation10], 4
          %s457 = int_to_ptr.vmem [resolvable:$true] %s456
          %459 = dma.hbm_to_vmem [thread:$0]  %s8, 16, %s457, [#allocation11]
        $region44: #{tpu_custom_call.1} parent=11 // pred_fallthru
          _
        // Predicated region
        $region45: #{tpu_custom_call.1} parent=11 // pred_check
          %p460 = pneg %p254
        $region46: #{tpu_custom_call.1} parent=11 // pred_check_branch
          %462 = sbr.rel (%p460) target = $region48
        $region47: #{tpu_custom_call.1} parent=11 // pred_region
          %s464 = ssub.s32 16, 16
          %465 = vsyncadd [#allocation11], %s464
          %s467 = sshll.u32 [#allocation12], 4
          %s468 = int_to_ptr.vmem [resolvable:$true] %s467
          %470 = dma.hbm_to_vmem [thread:$0]  %s9, 16, %s468, [#allocation11]
        $region48: #{tpu_custom_call.1} parent=11 // pred_fallthru
          _
        // Predicated region
        $region49: #{tpu_custom_call.1} parent=11 // pred_check
          %p471 = pneg %p275
        $region50: #{tpu_custom_call.1} parent=11 // pred_check_branch
          %473 = sbr.rel (%p471) target = $region52
        $region51: #{tpu_custom_call.1} parent=11 // pred_region
          _
        $region52: #{tpu_custom_call.1} parent=11 // pred_fallthru
          _
        // Predicated region
        $region53: #{tpu_custom_call.1} parent=11 // pred_check
          %p474 = pneg %p296
        $region54: #{tpu_custom_call.1} parent=11 // pred_check_branch
          %476 = sbr.rel (%p474) target = $region56
        $region55: #{tpu_custom_call.1} parent=11 // pred_region
          _
        $region56: #{tpu_custom_call.1} parent=11 // pred_fallthru
          _
        // Predicated region
        $region57: #{tpu_custom_call.1} parent=11 // pred_check
          %p477 = pneg %p317
        $region58: #{tpu_custom_call.1} parent=11 // pred_check_branch
          %479 = sbr.rel (%p477) target = $region60
        $region59: #{tpu_custom_call.1} parent=11 // pred_region
          _
        $region60: #{tpu_custom_call.1} parent=11 // pred_fallthru
          _
        // Predicated region
        $region61: #{tpu_custom_call.1} parent=11 // pred_check
          %p480 = pneg %p338
        $region62: #{tpu_custom_call.1} parent=11 // pred_check_branch
          %482 = sbr.rel (%p480) target = $region64
        $region63: #{tpu_custom_call.1} parent=11 // pred_region
          _
        $region64: #{tpu_custom_call.1} parent=11 // pred_fallthru
          _
        // Predicated region
        $region65: #{tpu_custom_call.1} parent=11 // pred_check
          %p483 = pneg %p359
        $region66: #{tpu_custom_call.1} parent=11 // pred_check_branch
          %485 = sbr.rel (%p483) target = $region68
        $region67: #{tpu_custom_call.1} parent=11 // pred_region
          _
        $region68: #{tpu_custom_call.1} parent=11 // pred_fallthru
          _
      $region12: #{tpu_custom_call.1} parent=5 // pred_fallthru
        _
      %p486 = scmp.lt.s32.totalorder %s27, 2
      // Predicated region
      $region69: #{tpu_custom_call.1} parent=5 // pred_check
        %p487 = pneg %p486
      $region70: #{tpu_custom_call.1} parent=5 // pred_check_branch
        %489 = sbr.rel (%p487) target = $region72
      $region71: #{tpu_custom_call.1} parent=5 // pred_region
        // Predicated region
        $region73: #{tpu_custom_call.1} parent=71 // pred_check
          %p490 = pneg %p59
        $region74: #{tpu_custom_call.1} parent=71 // pred_check_branch
          %492 = sbr.rel (%p490) target = $region76
        $region75: #{tpu_custom_call.1} parent=71 // pred_region
          %p493 = scmp.lt.s32.totalorder %s34, 1
          %s494 = scalar_select %p493, %s34, 1
          %s495 = smul.addr %s494, 8
          %s496 = scalar_lea.vmem %s0, %s495
        $region76: #{tpu_custom_call.1} parent=71 // pred_fallthru
          _
      $region72: #{tpu_custom_call.1} parent=5 // pred_fallthru
        _
      %p497 = scmp.le.s32.totalorder 1, %s27
      %p498 = scmp.lt.s32.totalorder %s27, 3
      %p499 = pnand %p497, %p498
      %p500 = pneg %p499
      // Predicated region
      $region77: #{tpu_custom_call.1} parent=5 // pred_check
        _
      $region78: #{tpu_custom_call.1} parent=5 // pred_check_branch
        %502 = sbr.rel (%p499) target = $region80
      $region79: #{tpu_custom_call.1} parent=5 // pred_region
        %s503 = ssub.s32 %s27, 1
        // Predicated region
        $region81: #{tpu_custom_call.1} parent=79 // pred_check
          %p504 = pneg %p149
        $region82: #{tpu_custom_call.1} parent=79 // pred_check_branch
          %506 = sbr.rel (%p504) target = $region84
        $region83: #{tpu_custom_call.1} parent=79 // pred_region
          %507 = dma.done [#allocation5], 16
        $region84: #{tpu_custom_call.1} parent=79 // pred_fallthru
          _
        // Predicated region
        $region85: #{tpu_custom_call.1} parent=79 // pred_check
          %p508 = pneg %p191
        $region86: #{tpu_custom_call.1} parent=79 // pred_check_branch
          %510 = sbr.rel (%p508) target = $region88
        $region87: #{tpu_custom_call.1} parent=79 // pred_region
          %511 = dma.done [#allocation8], 16
        $region88: #{tpu_custom_call.1} parent=79 // pred_fallthru
          _
        // Predicated region
        $region89: #{tpu_custom_call.1} parent=79 // pred_check
          %p512 = pneg %p212
        $region90: #{tpu_custom_call.1} parent=79 // pred_check_branch
          %514 = sbr.rel (%p512) target = $region92
        $region91: #{tpu_custom_call.1} parent=79 // pred_region
          %515 = dma.done [#allocation8], 256
        $region92: #{tpu_custom_call.1} parent=79 // pred_fallthru
          _
        // Predicated region
        $region93: #{tpu_custom_call.1} parent=79 // pred_check
          %p516 = pneg %p233
        $region94: #{tpu_custom_call.1} parent=79 // pred_check_branch
          %518 = sbr.rel (%p516) target = $region96
        $region95: #{tpu_custom_call.1} parent=79 // pred_region
          %519 = dma.done [#allocation11], 16
        $region96: #{tpu_custom_call.1} parent=79 // pred_fallthru
          _
        // Predicated region
        $region97: #{tpu_custom_call.1} parent=79 // pred_check
          %p520 = pneg %p254
        $region98: #{tpu_custom_call.1} parent=79 // pred_check_branch
          %522 = sbr.rel (%p520) target = $region100
        $region99: #{tpu_custom_call.1} parent=79 // pred_region
          %523 = dma.done [#allocation11], 16
        $region100: #{tpu_custom_call.1} parent=79 // pred_fallthru
          _
        %p524 = scmp.lt.s32.totalorder %s36, 1
        %s525 = scalar_select %p524, %s36, 1
        %s526 = smul.addr %s525, 8
        %s527 = scalar_lea.vmem %s0, %s526
        %p528 = pneg %p65
        %p529 = pneg %p62
        %p530 = pneg %p86
        %p531 = pneg %p83
        %p532 = pneg %p107
        %p533 = pneg %p104
        %p534 = pneg %p128
        %p535 = pneg %p125
        %p536 = pneg %p149
        %p537 = pneg %p146
        %p538 = pneg %p170
        %p539 = pneg %p167
        %p540 = pneg %p191
        %p541 = pneg %p188
        %p542 = pneg %p212
        %p543 = pneg %p209
        %p544 = pneg %p233
        %p545 = pneg %p230
        %p546 = pneg %p254
        %p547 = pneg %p251
        %p548 = pneg %p275
        %p549 = pneg %p272
        %p550 = pneg %p296
        %p551 = pneg %p293
        %p552 = pneg %p317
        %p553 = pneg %p314
        %p554 = pneg %p338
        %p555 = pneg %p335
        %p556 = pneg %p359
        %p557 = pneg %p356
        %p558 = pneg %p387
        %p559 = pneg %p384
        %s560 = sand.u32 %s374, 1
        %s561 = scalar_lea.sflag [#allocation6], %s560
        %s562 = sand.u32 %s374, 1
        %s563 = smul.addr %s562, 8
        %s564 = scalar_lea.vmem [#allocation13], %s563
        %p565 = scmp.lt.s32.totalorder %s36, 1
        %s566 = scalar_select %p565, %s36, 1
        %s567 = smul.addr %s566, 8
        %s568 = scalar_lea.vmem %s0, %s567
        %p570 = scmp.eq.s32.totalorder %s37, 0
        // Predicated region
        $region101: #{tpu_custom_call.1} parent=79 // pred_check
          %p571 = pneg %p570
        $region102: #{tpu_custom_call.1} parent=79 // pred_check_branch
          %573 = sbr.rel (%p571) target = $region104
        $region103: #{tpu_custom_call.1} parent=79 // pred_region
          %v574 = vld [vmem:[%s568] sm:$0xff]
          %v575 = vld [vmem:[%s1] sm:$0x1]
          %v576 = vld [vmem:[%s2] sm:$0x1]
          %vm577 = vcmask 261120
          %v578 = vsel %vm577, %v574, 0.0
          %579 = vadd.xlane.f32.xlu0 %v578
          %v580 = vpop.xlane.xlu0 %579
          %v581 = vrcp.pop 32.0
          %v582 = vmul.f32 %v580, %v581
          %v583 = vsub.f32 %v574, %v582
          %v584 = vmul.f32 %v583, %v583
          %v585 = vsel %vm577, %v584, 0.0
          %586 = vadd.xlane.f32.xlu0 %v585
          %v587 = vpop.xlane.xlu0 %586
          %v588 = vmul.f32 %v587, %v581
          %v589 = vadd.f32 %v588, 1e-06
          %v590 = vrsqrt.pop %v589
          %v591 = vmul.f32 %v583, %v590
          %v593 = vlaneseq
          %v594 = vshrl.u32 %v593, 7
          %v595 = vsub.s32 0, %v594
          %v596 = vrot.slane %v575, %v595
          %v598 = vmul.f32 %v591, %v596
          %v600 = vlaneseq
          %v601 = vshrl.u32 %v600, 7
          %v602 = vsub.s32 0, %v601
          %v603 = vrot.slane %v576, %v602
          %v605 = vadd.f32 %v598, %v603
          %v606 = vpack.c.bf16 %v605, %v605
          %v607 = vld [vmem:[%s5] sm:$0xf]
          %v608 = vld [vmem:[%s5 + $0x4] sm:$0xf]
          %v609 = vld [vmem:[%s5 + $0x8] sm:$0xf]
          %v610 = vld [vmem:[%s5 + $0xc] sm:$0xf]
          %v611 = vld [vmem:[#allocation7] sm:$0x1]
          %v613 = vlaneseq
          %v614 = vshrl.u32 %v613, 7
          %v615 = vsub.s32 0, %v614
          %v616 = vrot.slane %v611, %v615
          %v622 = vunpack.c.l.b16 %v607
          %v623 = vunpack.c.l.b16 %v608
          %v624 = vunpack.c.l.b16 %v609
          %v625 = vunpack.c.l.b16 %v610
          %v626 = vpack.c.b16 %v623, %v622
          %v627 = vpack.c.b16 %v625, %v624
          %v631 = vsel %vm577, %v606, 0
          %633 = vmatprep.subr.bf16.mxu0 0
          %634 = vmatpush1.bf16.msra.mxu0 %v626
          %635 = vmatprep.subr.bf16.mxu0 0
          %636 = vmatpush1.bf16.msra.mxu0 %v627
          %637 = vmatprep.subr.bf16.mxu0 0
          %638 = vmatpush1.bf16.msra.mxu0 0
          %639 = vmatprep.subr.bf16.mxu0 0
          %640 = vmatpush1.bf16.msra.mxu0 0
          %641 = vmatprep.subr.bf16.mxu0 0
          %642 = vmatpush1.bf16.msra.mxu0 0
          %643 = vmatprep.subr.bf16.mxu0 0
          %644 = vmatpush1.bf16.msra.mxu0 0
          %645 = vmatprep.subr.bf16.mxu0 0
          %646 = vmatpush1.bf16.msra.mxu0 0
          %647 = vmatprep.subr.bf16.mxu0 0
          %648 = vmatpush1.bf16.msra.mxu0 0
          %649 = vmatprep.subr.bf16.mxu0 0
          %650 = vmatpush1.bf16.msra.mxu0 0
          %651 = vmatprep.subr.bf16.mxu0 0
          %652 = vmatpush1.bf16.msra.mxu0 0
          %653 = vmatprep.subr.bf16.mxu0 0
          %654 = vmatpush1.bf16.msra.mxu0 0
          %655 = vmatprep.subr.bf16.mxu0 0
          %656 = vmatpush1.bf16.msra.mxu0 0
          %657 = vmatprep.subr.bf16.mxu0 0
          %658 = vmatpush1.bf16.msra.mxu0 0
          %659 = vmatprep.subr.bf16.mxu0 0
          %660 = vmatpush1.bf16.msra.mxu0 0
          %661 = vmatprep.subr.bf16.mxu0 0
          %662 = vmatpush1.bf16.msra.mxu0 0
          %663 = vmatprep.subr.bf16.mxu0 0
          %664 = vmatpush1.bf16.msra.mxu0 0
          %665 = vmatprep.mubr.bf16.mxu0 0
          %666 = vmatmul.mubr.bf16.gmra.mrb[0].mxu0 %v631
          %v667 = vpop.f32.mrb[0].mxu0
          %v668 = vadd.f32 %v616, %v667
          %v669 = vpop.f32.mrb[0].mxu0
          %v670 = vpop.f32.mrb[0].mxu0
          %v671 = vpop.f32.mrb[0].mxu0
          %672 = vdwg.mxu0
          %v673 = vpack.c.bf16 %v668, %v668
          %vm674 = vcmask 257024
          %675 = vst.msk [vmem:[#allocation2] sm:$0xf] %vm674, %v673
          %v677 = vunpack.c.l.b16 %v673
          %v678 = vpack.c.b16 %v677, %v677
          %679 = vrot.lane.b32.xlu0 %v678, 96
          %v680 = vpop.permute.xlu0 %679
          %682 = vst.msk [vmem:[#allocation3] sm:$0xf] %vm674, %v680
        $region104: #{tpu_custom_call.1} parent=79 // pred_fallthru
          _
        %s683 = smul.u32 %s37, 8
        %s684 = scalar_lea.vmem %s568, %s683
        %v685 = vld [vmem:[%s684] sm:$0xff]
        %v686 = vld [vmem:[%s1] sm:$0x1]
        %v687 = vld [vmem:[%s2] sm:$0x1]
        %vm688 = vcmask 261120
        %v689 = vsel %vm688, %v685, 0.0
        %690 = vadd.xlane.f32.xlu0 %v689
        %v691 = vpop.xlane.xlu0 %690
        %v692 = vrcp.pop 32.0
        %v693 = vmul.f32 %v691, %v692
        %v694 = vsub.f32 %v685, %v693
        %v695 = vmul.f32 %v694, %v694
        %v696 = vsel %vm688, %v695, 0.0
        %697 = vadd.xlane.f32.xlu0 %v696
        %v698 = vpop.xlane.xlu0 %697
        %v699 = vmul.f32 %v698, %v692
        %v700 = vadd.f32 %v699, 1e-06
        %v701 = vrsqrt.pop %v700
        %v702 = vmul.f32 %v694, %v701
        %v704 = vlaneseq
        %v705 = vshrl.u32 %v704, 7
        %v706 = vsub.s32 0, %v705
        %v707 = vrot.slane %v686, %v706
        %v709 = vmul.f32 %v702, %v707
        %v711 = vlaneseq
        %v712 = vshrl.u32 %v711, 7
        %v713 = vsub.s32 0, %v712
        %v714 = vrot.slane %v687, %v713
        %v716 = vadd.f32 %v709, %v714
        %v717 = vpack.c.bf16 %v716, %v716
        %v718 = vld [vmem:[%s3] sm:$0xf]
        %v719 = vld [vmem:[%s3 + $0x4] sm:$0xf]
        %v720 = vld [vmem:[%s3 + $0x8] sm:$0xf]
        %v721 = vld [vmem:[%s3 + $0xc] sm:$0xf]
        %v722 = vld [vmem:[#allocation4] sm:$0x1]
        %v724 = vlaneseq
        %v725 = vshrl.u32 %v724, 7
        %v726 = vsub.s32 0, %v725
        %v727 = vrot.slane %v722, %v726
        %v733 = vunpack.c.l.b16 %v718
        %v734 = vunpack.c.l.b16 %v719
        %v735 = vunpack.c.l.b16 %v720
        %v736 = vunpack.c.l.b16 %v721
        %v737 = vpack.c.b16 %v734, %v733
        %v738 = vpack.c.b16 %v736, %v735
        %v742 = vsel %vm688, %v717, 0
        %744 = vmatprep.subr.bf16.mxu0 0
        %745 = vmatpush1.bf16.msra.mxu0 %v737
        %746 = vmatprep.subr.bf16.mxu0 0
        %747 = vmatpush1.bf16.msra.mxu0 %v738
        %748 = vmatprep.subr.bf16.mxu0 0
        %749 = vmatpush1.bf16.msra.mxu0 0
        %750 = vmatprep.subr.bf16.mxu0 0
        %751 = vmatpush1.bf16.msra.mxu0 0
        %752 = vmatprep.subr.bf16.mxu0 0
        %753 = vmatpush1.bf16.msra.mxu0 0
        %754 = vmatprep.subr.bf16.mxu0 0
        %755 = vmatpush1.bf16.msra.mxu0 0
        %756 = vmatprep.subr.bf16.mxu0 0
        %757 = vmatpush1.bf16.msra.mxu0 0
        %758 = vmatprep.subr.bf16.mxu0 0
        %759 = vmatpush1.bf16.msra.mxu0 0
        %760 = vmatprep.subr.bf16.mxu0 0
        %761 = vmatpush1.bf16.msra.mxu0 0
        %762 = vmatprep.subr.bf16.mxu0 0
        %763 = vmatpush1.bf16.msra.mxu0 0
        %764 = vmatprep.subr.bf16.mxu0 0
        %765 = vmatpush1.bf16.msra.mxu0 0
        %766 = vmatprep.subr.bf16.mxu0 0
        %767 = vmatpush1.bf16.msra.mxu0 0
        %768 = vmatprep.subr.bf16.mxu0 0
        %769 = vmatpush1.bf16.msra.mxu0 0
        %770 = vmatprep.subr.bf16.mxu0 0
        %771 = vmatpush1.bf16.msra.mxu0 0
        %772 = vmatprep.subr.bf16.mxu0 0
        %773 = vmatpush1.bf16.msra.mxu0 0
        %774 = vmatprep.subr.bf16.mxu0 0
        %775 = vmatpush1.bf16.msra.mxu0 0
        %776 = vmatprep.mubr.bf16.mxu0 0
        %777 = vmatmul.mubr.bf16.gmra.mrb[0].mxu0 %v742
        %v778 = vpop.f32.mrb[0].mxu0
        %v779 = vadd.f32 %v727, %v778
        %v780 = vpop.f32.mrb[0].mxu0
        %v781 = vpop.f32.mrb[0].mxu0
        %v782 = vpop.f32.mrb[0].mxu0
        %783 = vdwg.mxu0
        %v784 = vpack.c.bf16 %v779, %v779
        %v785 = vld [vmem:[#allocation2] sm:$0xf]
        %v786 = vld [vmem:[#allocation3] sm:$0xf]
        %vm787 = vcmask 64512
        %v789 = vsel %vm787, %v784, 0
        %v792 = vsel %vm787, %v785, 0
        %794 = vmatprep.subr.bf16.mxu0 0
        %795 = vmatpush1.bf16.xpose.msra.mxu0 %v792
        %796 = vmatprep.subr.bf16.mxu0 0
        %797 = vmatpush1.bf16.xpose.msra.mxu0 0
        %798 = vmatprep.subr.bf16.mxu0 0
        %799 = vmatpush1.bf16.xpose.msra.mxu0 0
        %800 = vmatprep.subr.bf16.mxu0 0
        %801 = vmatpush1.bf16.xpose.msra.mxu0 0
        %802 = vmatprep.subr.bf16.mxu0 0
        %803 = vmatpush1.bf16.xpose.msra.mxu0 0
        %804 = vmatprep.subr.bf16.mxu0 0
        %805 = vmatpush1.bf16.xpose.msra.mxu0 0
        %806 = vmatprep.subr.bf16.mxu0 0
        %807 = vmatpush1.bf16.xpose.msra.mxu0 0
        %808 = vmatprep.subr.bf16.mxu0 0
        %809 = vmatpush1.bf16.xpose.msra.mxu0 0
        %810 = vmatprep.subr.bf16.mxu0 0
        %811 = vmatpush1.bf16.xpose.msra.mxu0 0
        %812 = vmatprep.subr.bf16.mxu0 0
        %813 = vmatpush1.bf16.xpose.msra.mxu0 0
        %814 = vmatprep.subr.bf16.mxu0 0
        %815 = vmatpush1.bf16.xpose.msra.mxu0 0
        %816 = vmatprep.subr.bf16.mxu0 0
        %817 = vmatpush1.bf16.xpose.msra.mxu0 0
        %818 = vmatprep.subr.bf16.mxu0 0
        %819 = vmatpush1.bf16.xpose.msra.mxu0 0
        %820 = vmatprep.subr.bf16.mxu0 0
        %821 = vmatpush1.bf16.xpose.msra.mxu0 0
        %822 = vmatprep.subr.bf16.mxu0 0
        %823 = vmatpush1.bf16.xpose.msra.mxu0 0
        %824 = vmatprep.subr.bf16.mxu0 0
        %825 = vmatpush1.bf16.xpose.msra.mxu0 0
        %826 = vmatprep.mubr.bf16.mxu0 0
        %827 = vmatmul.mubr.bf16.gmra.mrb[0].mxu0 %v789
        %v828 = vpop.f32.mrb[0].mxu0
        %v829 = vadd.f32 0.0, %v828
        %v830 = vpop.f32.mrb[0].mxu0
        %v831 = vpop.f32.mrb[0].mxu0
        %v832 = vpop.f32.mrb[0].mxu0
        %833 = vdwg.mxu0
        %v834 = vmul.f32 %v829, 0.35355338
        %v835 = vsel %vm787, %v834, -inf
        %836 = vmax.xlane.f32.xlu0 %v835
        %v837 = vpop.xlane.xlu0 %836
        %v838 = vsub.f32 %v834, %v837
        %v839 = vmul.f32 %v838, 1.442695
        %v840 = vpow.pop %v839
        %v841 = vsel %vm787, %v840, 0.0
        %842 = vadd.xlane.f32.xlu0 %v841
        %v843 = vpop.xlane.xlu0 %842
        %v844 = vrcp.pop %v843
        %v845 = vmul.f32 %v840, %v844
        %v846 = vpack.c.bf16 %v845, %v845
        %v848 = vsel %vm787, %v846, 0
        %vm850 = vcmask 1043456
        %v852 = vsel %vm850, %v786, 0
        %854 = vmatprep.subr.bf16.mxu0 0
        %855 = vmatpush1.bf16.msra.mxu0 %v852
        %856 = vmatprep.subr.bf16.mxu0 0
        %857 = vmatpush1.bf16.msra.mxu0 0
        %858 = vmatprep.subr.bf16.mxu0 0
        %859 = vmatpush1.bf16.msra.mxu0 0
        %860 = vmatprep.subr.bf16.mxu0 0
        %861 = vmatpush1.bf16.msra.mxu0 0
        %862 = vmatprep.subr.bf16.mxu0 0
        %863 = vmatpush1.bf16.msra.mxu0 0
        %864 = vmatprep.subr.bf16.mxu0 0
        %865 = vmatpush1.bf16.msra.mxu0 0
        %866 = vmatprep.subr.bf16.mxu0 0
        %867 = vmatpush1.bf16.msra.mxu0 0
        %868 = vmatprep.subr.bf16.mxu0 0
        %869 = vmatpush1.bf16.msra.mxu0 0
        %870 = vmatprep.subr.bf16.mxu0 0
        %871 = vmatpush1.bf16.msra.mxu0 0
        %872 = vmatprep.subr.bf16.mxu0 0
        %873 = vmatpush1.bf16.msra.mxu0 0
        %874 = vmatprep.subr.bf16.mxu0 0
        %875 = vmatpush1.bf16.msra.mxu0 0
        %876 = vmatprep.subr.bf16.mxu0 0
        %877 = vmatpush1.bf16.msra.mxu0 0
        %878 = vmatprep.subr.bf16.mxu0 0
        %879 = vmatpush1.bf16.msra.mxu0 0
        %880 = vmatprep.subr.bf16.mxu0 0
        %881 = vmatpush1.bf16.msra.mxu0 0
        %882 = vmatprep.subr.bf16.mxu0 0
        %883 = vmatpush1.bf16.msra.mxu0 0
        %884 = vmatprep.subr.bf16.mxu0 0
        %885 = vmatpush1.bf16.msra.mxu0 0
        %886 = vmatprep.mubr.bf16.mxu0 0
        %887 = vmatmul.mubr.bf16.gmra.mrb[0].mxu0 %v848
        %v888 = vpop.f32.mrb[0].mxu0
        %v889 = vadd.f32 0.0, %v888
        %v890 = vpop.f32.mrb[0].mxu0
        %v891 = vpop.f32.mrb[0].mxu0
        %v892 = vpop.f32.mrb[0].mxu0
        %893 = vdwg.mxu0
        %895 = vrot.lane.b32.xlu0 %v784, 120
        %v896 = vpop.permute.xlu0 %895
        %v898 = vunpack.c.l.b16 %v785
        %v899 = vpack.c.b16 %v898, %v898
        %900 = vrot.lane.b32.xlu0 %v899, 120
        %v901 = vpop.permute.xlu0 %900
        %v903 = vsel %vm787, %v896, 0
        %v906 = vsel %vm787, %v901, 0
        %908 = vmatprep.subr.bf16.mxu0 0
        %909 = vmatpush1.bf16.xpose.msra.mxu0 %v906
        %910 = vmatprep.subr.bf16.mxu0 0
        %911 = vmatpush1.bf16.xpose.msra.mxu0 0
        %912 = vmatprep.subr.bf16.mxu0 0
        %913 = vmatpush1.bf16.xpose.msra.mxu0 0
        %914 = vmatprep.subr.bf16.mxu0 0
        %915 = vmatpush1.bf16.xpose.msra.mxu0 0
        %916 = vmatprep.subr.bf16.mxu0 0
        %917 = vmatpush1.bf16.xpose.msra.mxu0 0
        %918 = vmatprep.subr.bf16.mxu0 0
        %919 = vmatpush1.bf16.xpose.msra.mxu0 0
        %920 = vmatprep.subr.bf16.mxu0 0
        %921 = vmatpush1.bf16.xpose.msra.mxu0 0
        %922 = vmatprep.subr.bf16.mxu0 0
        %923 = vmatpush1.bf16.xpose.msra.mxu0 0
        %924 = vmatprep.subr.bf16.mxu0 0
        %925 = vmatpush1.bf16.xpose.msra.mxu0 0
        %926 = vmatprep.subr.bf16.mxu0 0
        %927 = vmatpush1.bf16.xpose.msra.mxu0 0
        %928 = vmatprep.subr.bf16.mxu0 0
        %929 = vmatpush1.bf16.xpose.msra.mxu0 0
        %930 = vmatprep.subr.bf16.mxu0 0
        %931 = vmatpush1.bf16.xpose.msra.mxu0 0
        %932 = vmatprep.subr.bf16.mxu0 0
        %933 = vmatpush1.bf16.xpose.msra.mxu0 0
        %934 = vmatprep.subr.bf16.mxu0 0
        %935 = vmatpush1.bf16.xpose.msra.mxu0 0
        %936 = vmatprep.subr.bf16.mxu0 0
        %937 = vmatpush1.bf16.xpose.msra.mxu0 0
        %938 = vmatprep.subr.bf16.mxu0 0
        %939 = vmatpush1.bf16.xpose.msra.mxu0 0
        %940 = vmatprep.mubr.bf16.mxu0 0
        %941 = vmatmul.mubr.bf16.gmra.mrb[0].mxu0 %v903
        %v942 = vpop.f32.mrb[0].mxu0
        %v943 = vadd.f32 0.0, %v942
        %v944 = vpop.f32.mrb[0].mxu0
        %v945 = vpop.f32.mrb[0].mxu0
        %v946 = vpop.f32.mrb[0].mxu0
        %947 = vdwg.mxu0
        %v948 = vmul.f32 %v943, 0.35355338
        %v949 = vsel %vm787, %v948, -inf
        %950 = vmax.xlane.f32.xlu0 %v949
        %v951 = vpop.xlane.xlu0 %950
        %v952 = vsub.f32 %v948, %v951
        %v953 = vmul.f32 %v952, 1.442695
        %v954 = vpow.pop %v953
        %v955 = vsel %vm787, %v954, 0.0
        %956 = vadd.xlane.f32.xlu0 %v955
        %v957 = vpop.xlane.xlu0 %956
        %v958 = vrcp.pop %v957
        %v959 = vmul.f32 %v954, %v958
        %v960 = vpack.c.bf16 %v959, %v959
        %v962 = vunpack.c.l.b16 %v786
        %v963 = vpack.c.b16 %v962, %v962
        %964 = vrot.lane.b32.xlu0 %v963, 120
        %v965 = vpop.permute.xlu0 %964
        %v967 = vsel %vm787, %v960, 0
        %v970 = vsel %vm850, %v965, 0
        %972 = vmatprep.subr.bf16.mxu0 0
        %973 = vmatpush1.bf16.msra.mxu0 %v970
        %974 = vmatprep.subr.bf16.mxu0 0
        %975 = vmatpush1.bf16.msra.mxu0 0
        %976 = vmatprep.subr.bf16.mxu0 0
        %977 = vmatpush1.bf16.msra.mxu0 0
        %978 = vmatprep.subr.bf16.mxu0 0
        %979 = vmatpush1.bf16.msra.mxu0 0
        %980 = vmatprep.subr.bf16.mxu0 0
        %981 = vmatpush1.bf16.msra.mxu0 0
        %982 = vmatprep.subr.bf16.mxu0 0
        %983 = vmatpush1.bf16.msra.mxu0 0
        %984 = vmatprep.subr.bf16.mxu0 0
        %985 = vmatpush1.bf16.msra.mxu0 0
        %986 = vmatprep.subr.bf16.mxu0 0
        %987 = vmatpush1.bf16.msra.mxu0 0
        %988 = vmatprep.subr.bf16.mxu0 0
        %989 = vmatpush1.bf16.msra.mxu0 0
        %990 = vmatprep.subr.bf16.mxu0 0
        %991 = vmatpush1.bf16.msra.mxu0 0
        %992 = vmatprep.subr.bf16.mxu0 0
        %993 = vmatpush1.bf16.msra.mxu0 0
        %994 = vmatprep.subr.bf16.mxu0 0
        %995 = vmatpush1.bf16.msra.mxu0 0
        %996 = vmatprep.subr.bf16.mxu0 0
        %997 = vmatpush1.bf16.msra.mxu0 0
        %998 = vmatprep.subr.bf16.mxu0 0
        %999 = vmatpush1.bf16.msra.mxu0 0
        %1000 = vmatprep.subr.bf16.mxu0 0
        %1001 = vmatpush1.bf16.msra.mxu0 0
        %1002 = vmatprep.subr.bf16.mxu0 0
        %1003 = vmatpush1.bf16.msra.mxu0 0
        %1004 = vmatprep.mubr.bf16.mxu0 0
        %1005 = vmatmul.mubr.bf16.gmra.mrb[0].mxu0 %v967
        %v1006 = vpop.f32.mrb[0].mxu0
        %v1007 = vadd.f32 0.0, %v1006
        %v1008 = vpop.f32.mrb[0].mxu0
        %v1009 = vpop.f32.mrb[0].mxu0
        %v1010 = vpop.f32.mrb[0].mxu0
        %1011 = vdwg.mxu0
        %1012 = vrot.lane.b32.xlu0 %v784, 112
        %v1013 = vpop.permute.xlu0 %1012
        %1014 = vrot.lane.b32.xlu0 %v899, 112
        %v1015 = vpop.permute.xlu0 %1014
        %v1017 = vsel %vm787, %v1013, 0
        %v1020 = vsel %vm787, %v1015, 0
        %1022 = vmatprep.subr.bf16.mxu0 0
        %1023 = vmatpush1.bf16.xpose.msra.mxu0 %v1020
        %1024 = vmatprep.subr.bf16.mxu0 0
        %1025 = vmatpush1.bf16.xpose.msra.mxu0 0
        %1026 = vmatprep.subr.bf16.mxu0 0
        %1027 = vmatpush1.bf16.xpose.msra.mxu0 0
        %1028 = vmatprep.subr.bf16.mxu0 0
        %1029 = vmatpush1.bf16.xpose.msra.mxu0 0
        %1030 = vmatprep.subr.bf16.mxu0 0
        %1031 = vmatpush1.bf16.xpose.msra.mxu0 0
        %1032 = vmatprep.subr.bf16.mxu0 0
        %1033 = vmatpush1.bf16.xpose.msra.mxu0 0
        %1034 = vmatprep.subr.bf16.mxu0 0
        %1035 = vmatpush1.bf16.xpose.msra.mxu0 0
        %1036 = vmatprep.subr.bf16.mxu0 0
        %1037 = vmatpush1.bf16.xpose.msra.mxu0 0
        %1038 = vmatprep.subr.bf16.mxu0 0
        %1039 = vmatpush1.bf16.xpose.msra.mxu0 0
        %1040 = vmatprep.subr.bf16.mxu0 0
        %1041 = vmatpush1.bf16.xpose.msra.mxu0 0
        %1042 = vmatprep.subr.bf16.mxu0 0
        %1043 = vmatpush1.bf16.xpose.msra.mxu0 0
        %1044 = vmatprep.subr.bf16.mxu0 0
        %1045 = vmatpush1.bf16.xpose.msra.mxu0 0
        %1046 = vmatprep.subr.bf16.mxu0 0
        %1047 = vmatpush1.bf16.xpose.msra.mxu0 0
        %1048 = vmatprep.subr.bf16.mxu0 0
        %1049 = vmatpush1.bf16.xpose.msra.mxu0 0
        %1050 = vmatprep.subr.bf16.mxu0 0
        %1051 = vmatpush1.bf16.xpose.msra.mxu0 0
        %1052 = vmatprep.subr.bf16.mxu0 0
        %1053 = vmatpush1.bf16.xpose.msra.mxu0 0
        %1054 = vmatprep.mubr.bf16.mxu0 0
        %1055 = vmatmul.mubr.bf16.gmra.mrb[0].mxu0 %v1017
        %v1056 = vpop.f32.mrb[0].mxu0
        %v1057 = vadd.f32 0.0, %v1056
        %v1058 = vpop.f32.mrb[0].mxu0
        %v1059 = vpop.f32.mrb[0].mxu0
        %v1060 = vpop.f32.mrb[0].mxu0
        %1061 = vdwg.mxu0
        %v1062 = vmul.f32 %v1057, 0.35355338
        %v1063 = vsel %vm787, %v1062, -inf
        %1064 = vmax.xlane.f32.xlu0 %v1063
        %v1065 = vpop.xlane.xlu0 %1064
        %v1066 = vsub.f32 %v1062, %v1065
        %v1067 = vmul.f32 %v1066, 1.442695
        %v1068 = vpow.pop %v1067
        %v1069 = vsel %vm787, %v1068, 0.0
        %1070 = vadd.xlane.f32.xlu0 %v1069
        %v1071 = vpop.xlane.xlu0 %1070
        %v1072 = vrcp.pop %v1071
        %v1073 = vmul.f32 %v1068, %v1072
        %v1074 = vpack.c.bf16 %v1073, %v1073
        %1075 = vrot.lane.b32.xlu0 %v963, 112
        %v1076 = vpop.permute.xlu0 %1075
        %v1078 = vsel %vm787, %v1074, 0
        %v1081 = vsel %vm850, %v1076, 0
        %1083 = vmatprep.subr.bf16.mxu0 0
        %1084 = vmatpush1.bf16.msra.mxu0 %v1081
        %1085 = vmatprep.subr.bf16.mxu0 0
        %1086 = vmatpush1.bf16.msra.mxu0 0
        %1087 = vmatprep.subr.bf16.mxu0 0
        %1088 = vmatpush1.bf16.msra.mxu0 0
        %1089 = vmatprep.subr.bf16.mxu0 0
        %1090 = vmatpush1.bf16.msra.mxu0 0
        %1091 = vmatprep.subr.bf16.mxu0 0
        %1092 = vmatpush1.bf16.msra.mxu0 0
        %1093 = vmatprep.subr.bf16.mxu0 0
        %1094 = vmatpush1.bf16.msra.mxu0 0
        %1095 = vmatprep.subr.bf16.mxu0 0
        %1096 = vmatpush1.bf16.msra.mxu0 0
        %1097 = vmatprep.subr.bf16.mxu0 0
        %1098 = vmatpush1.bf16.msra.mxu0 0
        %1099 = vmatprep.subr.bf16.mxu0 0
        %1100 = vmatpush1.bf16.msra.mxu0 0
        %1101 = vmatprep.subr.bf16.mxu0 0
        %1102 = vmatpush1.bf16.msra.mxu0 0
        %1103 = vmatprep.subr.bf16.mxu0 0
        %1104 = vmatpush1.bf16.msra.mxu0 0
        %1105 = vmatprep.subr.bf16.mxu0 0
        %1106 = vmatpush1.bf16.msra.mxu0 0
        %1107 = vmatprep.subr.bf16.mxu0 0
        %1108 = vmatpush1.bf16.msra.mxu0 0
        %1109 = vmatprep.subr.bf16.mxu0 0
        %1110 = vmatpush1.bf16.msra.mxu0 0
        %1111 = vmatprep.subr.bf16.mxu0 0
        %1112 = vmatpush1.bf16.msra.mxu0 0
        %1113 = vmatprep.subr.bf16.mxu0 0
        %1114 = vmatpush1.bf16.msra.mxu0 0
        %1115 = vmatprep.mubr.bf16.mxu0 0
        %1116 = vmatmul.mubr.bf16.gmra.mrb[0].mxu0 %v1078
        %v1117 = vpop.f32.mrb[0].mxu0
        %v1118 = vadd.f32 0.0, %v1117
        %v1119 = vpop.f32.mrb[0].mxu0
        %v1120 = vpop.f32.mrb[0].mxu0
        %v1121 = vpop.f32.mrb[0].mxu0
        %1122 = vdwg.mxu0
        %1123 = vrot.lane.b32.xlu0 %v784, 104
        %v1124 = vpop.permute.xlu0 %1123
        %1125 = vrot.lane.b32.xlu0 %v899, 104
        %v1126 = vpop.permute.xlu0 %1125
        %v1128 = vsel %vm787, %v1124, 0
        %v1131 = vsel %vm787, %v1126, 0
        %1133 = vmatprep.subr.bf16.mxu0 0
        %1134 = vmatpush1.bf16.xpose.msra.mxu0 %v1131
        %1135 = vmatprep.subr.bf16.mxu0 0
        %1136 = vmatpush1.bf16.xpose.msra.mxu0 0
        %1137 = vmatprep.subr.bf16.mxu0 0
        %1138 = vmatpush1.bf16.xpose.msra.mxu0 0
        %1139 = vmatprep.subr.bf16.mxu0 0
        %1140 = vmatpush1.bf16.xpose.msra.mxu0 0
        %1141 = vmatprep.subr.bf16.mxu0 0
        %1142 = vmatpush1.bf16.xpose.msra.mxu0 0
        %1143 = vmatprep.subr.bf16.mxu0 0
        %1144 = vmatpush1.bf16.xpose.msra.mxu0 0
        %1145 = vmatprep.subr.bf16.mxu0 0
        %1146 = vmatpush1.bf16.xpose.msra.mxu0 0
        %1147 = vmatprep.subr.bf16.mxu0 0
        %1148 = vmatpush1.bf16.xpose.msra.mxu0 0
        %1149 = vmatprep.subr.bf16.mxu0 0
        %1150 = vmatpush1.bf16.xpose.msra.mxu0 0
        %1151 = vmatprep.subr.bf16.mxu0 0
        %1152 = vmatpush1.bf16.xpose.msra.mxu0 0
        %1153 = vmatprep.subr.bf16.mxu0 0
        %1154 = vmatpush1.bf16.xpose.msra.mxu0 0
        %1155 = vmatprep.subr.bf16.mxu0 0
        %1156 = vmatpush1.bf16.xpose.msra.mxu0 0
        %1157 = vmatprep.subr.bf16.mxu0 0
        %1158 = vmatpush1.bf16.xpose.msra.mxu0 0
        %1159 = vmatprep.subr.bf16.mxu0 0
        %1160 = vmatpush1.bf16.xpose.msra.mxu0 0
        %1161 = vmatprep.subr.bf16.mxu0 0
        %1162 = vmatpush1.bf16.xpose.msra.mxu0 0
        %1163 = vmatprep.subr.bf16.mxu0 0
        %1164 = vmatpush1.bf16.xpose.msra.mxu0 0
        %1165 = vmatprep.mubr.bf16.mxu0 0
        %1166 = vmatmul.mubr.bf16.gmra.mrb[0].mxu0 %v1128
        %v1167 = vpop.f32.mrb[0].mxu0
        %v1168 = vadd.f32 0.0, %v1167
        %v1169 = vpop.f32.mrb[0].mxu0
        %v1170 = vpop.f32.mrb[0].mxu0
        %v1171 = vpop.f32.mrb[0].mxu0
        %1172 = vdwg.mxu0
        %v1173 = vmul.f32 %v1168, 0.35355338
        %v1174 = vsel %vm787, %v1173, -inf
        %1175 = vmax.xlane.f32.xlu0 %v1174
        %v1176 = vpop.xlane.xlu0 %1175
        %v1177 = vsub.f32 %v1173, %v1176
        %v1178 = vmul.f32 %v1177, 1.442695
        %v1179 = vpow.pop %v1178
        %v1180 = vsel %vm787, %v1179, 0.0
        %1181 = vadd.xlane.f32.xlu0 %v1180
        %v1182 = vpop.xlane.xlu0 %1181
        %v1183 = vrcp.pop %v1182
        %v1184 = vmul.f32 %v1179, %v1183
        %v1185 = vpack.c.bf16 %v1184, %v1184
        %1186 = vrot.lane.b32.xlu0 %v963, 104
        %v1187 = vpop.permute.xlu0 %1186
        %v1189 = vsel %vm787, %v1185, 0
        %v1192 = vsel %vm850, %v1187, 0
        %1194 = vmatprep.subr.bf16.mxu0 0
        %1195 = vmatpush1.bf16.msra.mxu0 %v1192
        %1196 = vmatprep.subr.bf16.mxu0 0
        %1197 = vmatpush1.bf16.msra.mxu0 0
        %1198 = vmatprep.subr.bf16.mxu0 0
        %1199 = vmatpush1.bf16.msra.mxu0 0
        %1200 = vmatprep.subr.bf16.mxu0 0
        %1201 = vmatpush1.bf16.msra.mxu0 0
        %1202 = vmatprep.subr.bf16.mxu0 0
        %1203 = vmatpush1.bf16.msra.mxu0 0
        %1204 = vmatprep.subr.bf16.mxu0 0
        %1205 = vmatpush1.bf16.msra.mxu0 0
        %1206 = vmatprep.subr.bf16.mxu0 0
        %1207 = vmatpush1.bf16.msra.mxu0 0
        %1208 = vmatprep.subr.bf16.mxu0 0
        %1209 = vmatpush1.bf16.msra.mxu0 0
        %1210 = vmatprep.subr.bf16.mxu0 0
        %1211 = vmatpush1.bf16.msra.mxu0 0
        %1212 = vmatprep.subr.bf16.mxu0 0
        %1213 = vmatpush1.bf16.msra.mxu0 0
        %1214 = vmatprep.subr.bf16.mxu0 0
        %1215 = vmatpush1.bf16.msra.mxu0 0
        %1216 = vmatprep.subr.bf16.mxu0 0
        %1217 = vmatpush1.bf16.msra.mxu0 0
        %1218 = vmatprep.subr.bf16.mxu0 0
        %1219 = vmatpush1.bf16.msra.mxu0 0
        %1220 = vmatprep.subr.bf16.mxu0 0
        %1221 = vmatpush1.bf16.msra.mxu0 0
        %1222 = vmatprep.subr.bf16.mxu0 0
        %1223 = vmatpush1.bf16.msra.mxu0 0
        %1224 = vmatprep.subr.bf16.mxu0 0
        %1225 = vmatpush1.bf16.msra.mxu0 0
        %1226 = vmatprep.mubr.bf16.mxu0 0
        %1227 = vmatmul.mubr.bf16.gmra.mrb[0].mxu0 %v1189
        %v1228 = vpop.f32.mrb[0].mxu0
        %v1229 = vadd.f32 0.0, %v1228
        %v1230 = vpop.f32.mrb[0].mxu0
        %v1231 = vpop.f32.mrb[0].mxu0
        %v1232 = vpop.f32.mrb[0].mxu0
        %1233 = vdwg.mxu0
        %1235 = vrot.lane.b32.xlu0 %v1007, 8
        %v1236 = vpop.permute.xlu0 %1235
        %1239 = vrot.lane.b32.xlu0 %v1118, 16
        %v1240 = vpop.permute.xlu0 %1239
        %1243 = vrot.lane.b32.xlu0 %v1229, 24
        %v1244 = vpop.permute.xlu0 %1243
        %v1246 = vsel %vm787, %v889, %v1236
        %vm1247 = vcmask 130048
        %v1248 = vsel %vm1247, %v1246, %v1240
        %vm1249 = vcmask 195584
        %v1250 = vsel %vm1249, %v1248, %v1244
        %v1251 = vpack.c.bf16 %v1250, %v1250
        %v1252 = vld [vmem:[#allocation9] sm:$0xf]
        %v1253 = vld [vmem:[#allocation9 + $0x4] sm:$0xf]
        %v1254 = vld [vmem:[#allocation9 + $0x8] sm:$0xf]
        %v1255 = vld [vmem:[#allocation9 + $0xc] sm:$0xf]
        %v1256 = vld [vmem:[#allocation10] sm:$0x1]
        %v1258 = vlaneseq
        %v1259 = vshrl.u32 %v1258, 7
        %v1260 = vsub.s32 0, %v1259
        %v1261 = vrot.slane %v1256, %v1260
        %v1267 = vunpack.c.l.b16 %v1252
        %v1268 = vunpack.c.l.b16 %v1253
        %v1269 = vunpack.c.l.b16 %v1254
        %v1270 = vunpack.c.l.b16 %v1255
        %v1271 = vpack.c.b16 %v1268, %v1267
        %v1272 = vpack.c.b16 %v1270, %v1269
        %v1276 = vsel %vm688, %v1251, 0
        %1278 = vmatprep.subr.bf16.mxu0 0
        %1279 = vmatpush1.bf16.msra.mxu0 %v1271
        %1280 = vmatprep.subr.bf16.mxu0 0
        %1281 = vmatpush1.bf16.msra.mxu0 %v1272
        %1282 = vmatprep.subr.bf16.mxu0 0
        %1283 = vmatpush1.bf16.msra.mxu0 0
        %1284 = vmatprep.subr.bf16.mxu0 0
        %1285 = vmatpush1.bf16.msra.mxu0 0
        %1286 = vmatprep.subr.bf16.mxu0 0
        %1287 = vmatpush1.bf16.msra.mxu0 0
        %1288 = vmatprep.subr.bf16.mxu0 0
        %1289 = vmatpush1.bf16.msra.mxu0 0
        %1290 = vmatprep.subr.bf16.mxu0 0
        %1291 = vmatpush1.bf16.msra.mxu0 0
        %1292 = vmatprep.subr.bf16.mxu0 0
        %1293 = vmatpush1.bf16.msra.mxu0 0
        %1294 = vmatprep.subr.bf16.mxu0 0
        %1295 = vmatpush1.bf16.msra.mxu0 0
        %1296 = vmatprep.subr.bf16.mxu0 0
        %1297 = vmatpush1.bf16.msra.mxu0 0
        %1298 = vmatprep.subr.bf16.mxu0 0
        %1299 = vmatpush1.bf16.msra.mxu0 0
        %1300 = vmatprep.subr.bf16.mxu0 0
        %1301 = vmatpush1.bf16.msra.mxu0 0
        %1302 = vmatprep.subr.bf16.mxu0 0
        %1303 = vmatpush1.bf16.msra.mxu0 0
        %1304 = vmatprep.subr.bf16.mxu0 0
        %1305 = vmatpush1.bf16.msra.mxu0 0
        %1306 = vmatprep.subr.bf16.mxu0 0
        %1307 = vmatpush1.bf16.msra.mxu0 0
        %1308 = vmatprep.subr.bf16.mxu0 0
        %1309 = vmatpush1.bf16.msra.mxu0 0
        %1310 = vmatprep.mubr.bf16.mxu0 0
        %1311 = vmatmul.mubr.bf16.gmra.mrb[0].mxu0 %v1276
        %v1312 = vpop.f32.mrb[0].mxu0
        %v1313 = vadd.f32 %v1261, %v1312
        %v1314 = vpop.f32.mrb[0].mxu0
        %v1315 = vpop.f32.mrb[0].mxu0
        %v1316 = vpop.f32.mrb[0].mxu0
        %1317 = vdwg.mxu0
        %v1318 = vadd.f32 %v685, %v1313
        %v1319 = vld [vmem:[#allocation12] sm:$0x1]
        %v1320 = vld [vmem:[%s10] sm:$0x1]
        %v1321 = vsel %vm688, %v1318, 0.0
        %1322 = vadd.xlane.f32.xlu0 %v1321
        %v1323 = vpop.xlane.xlu0 %1322
        %v1324 = vmul.f32 %v1323, %v692
        %v1325 = vsub.f32 %v1318, %v1324
        %v1326 = vmul.f32 %v1325, %v1325
        %v1327 = vsel %vm688, %v1326, 0.0
        %1328 = vadd.xlane.f32.xlu0 %v1327
        %v1329 = vpop.xlane.xlu0 %1328
        %v1330 = vmul.f32 %v1329, %v692
        %v1331 = vadd.f32 %v1330, 1e-06
        %v1332 = vrsqrt.pop %v1331
        %v1333 = vmul.f32 %v1325, %v1332
        %v1335 = vlaneseq
        %v1336 = vshrl.u32 %v1335, 7
        %v1337 = vsub.s32 0, %v1336
        %v1338 = vrot.slane %v1319, %v1337
        %v1340 = vmul.f32 %v1333, %v1338
        %v1342 = vlaneseq
        %v1343 = vshrl.u32 %v1342, 7
        %v1344 = vsub.s32 0, %v1343
        %v1345 = vrot.slane %v1320, %v1344
        %v1347 = vadd.f32 %v1340, %v1345
        %v1348 = vpack.c.bf16 %v1347, %v1347
        %v1349 = vld [vmem:[%s11] sm:$0xf]
        %v1350 = vld [vmem:[%s11 + $0x4] sm:$0xf]
        %v1351 = vld [vmem:[%s11 + $0x8] sm:$0xf]
        %v1352 = vld [vmem:[%s11 + $0xc] sm:$0xf]
        %v1353 = vld [vmem:[%s12] sm:$0x1]
        %v1355 = vlaneseq
        %v1356 = vshrl.u32 %v1355, 7
        %v1357 = vsub.s32 0, %v1356
        %v1358 = vrot.slane %v1353, %v1357
        %v1364 = vunpack.c.l.b16 %v1349
        %v1365 = vunpack.c.l.b16 %v1350
        %v1366 = vunpack.c.l.b16 %v1351
        %v1367 = vunpack.c.l.b16 %v1352
        %v1368 = vpack.c.b16 %v1365, %v1364
        %v1369 = vpack.c.b16 %v1367, %v1366
        %v1373 = vsel %vm688, %v1348, 0
        %1375 = vmatprep.subr.bf16.mxu0 0
        %1376 = vmatpush1.bf16.msra.mxu0 %v1368
        %1377 = vmatprep.subr.bf16.mxu0 0
        %1378 = vmatpush1.bf16.msra.mxu0 %v1369
        %1379 = vmatprep.subr.bf16.mxu0 0
        %1380 = vmatpush1.bf16.msra.mxu0 0
        %1381 = vmatprep.subr.bf16.mxu0 0
        %1382 = vmatpush1.bf16.msra.mxu0 0
        %1383 = vmatprep.subr.bf16.mxu0 0
        %1384 = vmatpush1.bf16.msra.mxu0 0
        %1385 = vmatprep.subr.bf16.mxu0 0
        %1386 = vmatpush1.bf16.msra.mxu0 0
        %1387 = vmatprep.subr.bf16.mxu0 0
        %1388 = vmatpush1.bf16.msra.mxu0 0
        %1389 = vmatprep.subr.bf16.mxu0 0
        %1390 = vmatpush1.bf16.msra.mxu0 0
        %1391 = vmatprep.subr.bf16.mxu0 0
        %1392 = vmatpush1.bf16.msra.mxu0 0
        %1393 = vmatprep.subr.bf16.mxu0 0
        %1394 = vmatpush1.bf16.msra.mxu0 0
        %1395 = vmatprep.subr.bf16.mxu0 0
        %1396 = vmatpush1.bf16.msra.mxu0 0
        %1397 = vmatprep.subr.bf16.mxu0 0
        %1398 = vmatpush1.bf16.msra.mxu0 0
        %1399 = vmatprep.subr.bf16.mxu0 0
        %1400 = vmatpush1.bf16.msra.mxu0 0
        %1401 = vmatprep.subr.bf16.mxu0 0
        %1402 = vmatpush1.bf16.msra.mxu0 0
        %1403 = vmatprep.subr.bf16.mxu0 0
        %1404 = vmatpush1.bf16.msra.mxu0 0
        %1405 = vmatprep.subr.bf16.mxu0 0
        %1406 = vmatpush1.bf16.msra.mxu0 0
        %1407 = vmatprep.mubr.bf16.mxu0 0
        %1408 = vmatmul.mubr.bf16.gmra.mrb[0].mxu0 %v1373
        %v1409 = vpop.f32.mrb[0].mxu0
        %v1410 = vadd.f32 %v1358, %v1409
        %v1411 = vpop.f32.mrb[0].mxu0
        %v1412 = vpop.f32.mrb[0].mxu0
        %v1413 = vpop.f32.mrb[0].mxu0
        %1414 = vdwg.mxu0
        %v1415 = vmul.f32 %v1410, 0.5
        %v1416 = vmul.f32 %v1410, 0.70710677
        %v1417 = verf.f32.pop %v1416
        %v1418 = vadd.f32 %v1417, 1.0
        %v1419 = vmul.f32 %v1415, %v1418
        %v1420 = vpack.c.bf16 %v1419, %v1419
        %v1421 = vld [vmem:[%s13] sm:$0xf]
        %v1422 = vld [vmem:[%s13 + $0x4] sm:$0xf]
        %v1423 = vld [vmem:[%s13 + $0x8] sm:$0xf]
        %v1424 = vld [vmem:[%s13 + $0xc] sm:$0xf]
        %v1425 = vld [vmem:[%s13 + $0x10] sm:$0xf]
        %v1426 = vld [vmem:[%s13 + $0x14] sm:$0xf]
        %v1427 = vld [vmem:[%s13 + $0x18] sm:$0xf]
        %v1428 = vld [vmem:[%s13 + $0x1c] sm:$0xf]
        %v1429 = vld [vmem:[%s14] sm:$0x1]
        %v1431 = vlaneseq
        %v1432 = vshrl.u32 %v1431, 7
        %v1433 = vsub.s32 0, %v1432
        %v1434 = vrot.slane %v1429, %v1433
        %v1444 = vunpack.c.l.b16 %v1421
        %v1445 = vunpack.c.l.b16 %v1422
        %v1446 = vunpack.c.l.b16 %v1423
        %v1447 = vunpack.c.l.b16 %v1424
        %v1448 = vunpack.c.l.b16 %v1425
        %v1449 = vunpack.c.l.b16 %v1426
        %v1450 = vunpack.c.l.b16 %v1427
        %v1451 = vunpack.c.l.b16 %v1428
        %v1452 = vpack.c.b16 %v1445, %v1444
        %v1453 = vpack.c.b16 %v1447, %v1446
        %v1454 = vpack.c.b16 %v1449, %v1448
        %v1455 = vpack.c.b16 %v1451, %v1450
        %vm1460 = vcmask 523264
        %v1462 = vsel %vm1460, %v1420, 0
        %1464 = vmatprep.subr.bf16.mxu0 0
        %1465 = vmatpush1.bf16.msra.mxu0 %v1452
        %1466 = vmatprep.subr.bf16.mxu0 0
        %1467 = vmatpush1.bf16.msra.mxu0 %v1453
        %1468 = vmatprep.subr.bf16.mxu0 0
        %1469 = vmatpush1.bf16.msra.mxu0 %v1454
        %1470 = vmatprep.subr.bf16.mxu0 0
        %1471 = vmatpush1.bf16.msra.mxu0 %v1455
        %1472 = vmatprep.subr.bf16.mxu0 0
        %1473 = vmatpush1.bf16.msra.mxu0 0
        %1474 = vmatprep.subr.bf16.mxu0 0
        %1475 = vmatpush1.bf16.msra.mxu0 0
        %1476 = vmatprep.subr.bf16.mxu0 0
        %1477 = vmatpush1.bf16.msra.mxu0 0
        %1478 = vmatprep.subr.bf16.mxu0 0
        %1479 = vmatpush1.bf16.msra.mxu0 0
        %1480 = vmatprep.subr.bf16.mxu0 0
        %1481 = vmatpush1.bf16.msra.mxu0 0
        %1482 = vmatprep.subr.bf16.mxu0 0
        %1483 = vmatpush1.bf16.msra.mxu0 0
        %1484 = vmatprep.subr.bf16.mxu0 0
        %1485 = vmatpush1.bf16.msra.mxu0 0
        %1486 = vmatprep.subr.bf16.mxu0 0
        %1487 = vmatpush1.bf16.msra.mxu0 0
        %1488 = vmatprep.subr.bf16.mxu0 0
        %1489 = vmatpush1.bf16.msra.mxu0 0
        %1490 = vmatprep.subr.bf16.mxu0 0
        %1491 = vmatpush1.bf16.msra.mxu0 0
        %1492 = vmatprep.subr.bf16.mxu0 0
        %1493 = vmatpush1.bf16.msra.mxu0 0
        %1494 = vmatprep.subr.bf16.mxu0 0
        %1495 = vmatpush1.bf16.msra.mxu0 0
        %1496 = vmatprep.mubr.bf16.mxu0 0
        %1497 = vmatmul.mubr.bf16.gmra.mrb[0].mxu0 %v1462
        %v1498 = vpop.f32.mrb[0].mxu0
        %v1499 = vadd.f32 %v1434, %v1498
        %v1500 = vpop.f32.mrb[0].mxu0
        %v1501 = vpop.f32.mrb[0].mxu0
        %v1502 = vpop.f32.mrb[0].mxu0
        %1503 = vdwg.mxu0
        %v1504 = vadd.f32 %v1318, %v1499
        %1505 = vst.msk [vmem:[%s564] sm:$0xff] %vm688, %v1504
        %s1506 = sand.u32 %s374, 1
        %s1507 = scalar_lea.sflag [#allocation6], %s1506
        %s1508 = sand.u32 %s374, 1
        %s1509 = smul.addr %s1508, 8
        %s1510 = scalar_lea.vmem [#allocation13], %s1509
        // Predicated region
        $region105: #{tpu_custom_call.1} parent=79 // pred_check
          %p1511 = pneg %p384
        $region106: #{tpu_custom_call.1} parent=79 // pred_check_branch
          %1513 = sbr.rel (%p1511) target = $region108
        $region107: #{tpu_custom_call.1} parent=79 // pred_region
          %s1515 = ssub.s32 128, 128
          %1516 = vsyncadd %s1507, %s1515
          %s1517 = sadd.s32 %s37, %s36
          %s1518 = smul.addr %s1517, 128
          %s1519 = scalar_lea.hbm %s15, %s1518
          %s1521 = sshll.u32 %s1510, 4
          %s1522 = int_to_ptr.vmem [resolvable:$true] %s1521
          %1524 = dma.vmem_to_hbm [thread:$0]  %s1522, 128, %s1519, %s1507
        $region108: #{tpu_custom_call.1} parent=79 // pred_fallthru
          _
      $region80: #{tpu_custom_call.1} parent=5 // pred_fallthru
        _
      %p1525 = scmp.le.s32.totalorder 2, %s27
      // Predicated region
      $region109: #{tpu_custom_call.1} parent=5 // pred_check
        %p1526 = pneg %p1525
      $region110: #{tpu_custom_call.1} parent=5 // pred_check_branch
        %1528 = sbr.rel (%p1526) target = $region112
      $region111: #{tpu_custom_call.1} parent=5 // pred_region
        %s1529 = ssub.s32 %s27, 2
        // Predicated region
        $region113: #{tpu_custom_call.1} parent=111 // pred_check
          %p1530 = pneg %p390
        $region114: #{tpu_custom_call.1} parent=111 // pred_check_branch
          %1532 = sbr.rel (%p1530) target = $region116
        $region115: #{tpu_custom_call.1} parent=111 // pred_region
          %s1533 = sand.u32 %s375, 1
          %s1534 = scalar_lea.sflag [#allocation6], %s1533
          %s1535 = sand.u32 %s375, 1
          %s1536 = smul.addr %s1535, 8
          %s1537 = scalar_lea.vmem [#allocation13], %s1536
          %1538 = dma.done %s1534, 128
        $region116: #{tpu_custom_call.1} parent=111 // pred_fallthru
          _
      $region112: #{tpu_custom_call.1} parent=5 // pred_fallthru
        _
    $region6: #{tpu_custom_call.1} parent=1 // loop_footer
      %s31 = sadd.s32 1, %s27
    $region7: #{tpu_custom_call.1} parent=1 // loop_footer_branch
      %26 = sbr.rel target = $region3
    $region8: #{tpu_custom_call.1} parent=1 // loop_exit
      _
    %1539 = vsyncpa [#allocation5], 1
    %s1540 = scalar_lea.sflag [#allocation5], 1
    %1541 = vsyncpa %s1540, 1
    %1542 = vsyncpa [#allocation8], 1
    %1543 = vsyncpa [#allocation11], 1
    %1544 = vsyncpa [#allocation6], 1
    %s1545 = scalar_lea.sflag [#allocation6], 1
    %1546 = vsyncpa %s1545, 1

</llo_original>
